<compile_context>
chip_gen: v6e
topology: v6e:2x2x1
jax: 0.10.0
libtpu: 0.0.40
codegen_flags: <defaults>
</compile_context>

<pallas_src>
import jax
import jax.numpy as jnp
import numpy as np
from jax.experimental import pallas as pl
from jax.experimental.pallas import tpu as pltpu


def _inner_chunk(tb):
    """Lane-chunk size so per-chunk accumulators stay vreg-sized."""
    for c in (512, 256, 128):
        if tb % c == 0:
            return c
    return tb


def fm_kernel(s_one_ref, s_emb_ref, dense_ref, wblk_ref, out_ref):
    """FM first/second-order reductions, batch-on-lanes layout.

    s_one_ref : (F, tb)     bf16  first-order embeddings (fields on sublanes)
    s_emb_ref : (F, K, tb)  bf16  second-order embeddings (field-major)
    dense_ref : (D, tb)     f32   dense features
    wblk_ref  : (8+2K, 2D)  f32   merged dense weights:
                                  row 0        = [w_one | 0 ]
                                  rows 8..8+K  = [W^T   | 0 ]
                                  rows 8+K..   = [0 | W^T*W^T]
    out_ref   : (2, tb)     f32   row 0 = y_first, row 1 = y_second
    """
    F, K, tb = s_emb_ref.shape
    inner = _inner_chunk(tb)
    wblk = wblk_ref[...]

    for c in range(tb // inner):
        sl = pl.ds(c * inner, inner)

        # ---- dense side: one merged MXU pass over rhs = [x ; x^2] ----------
        x = dense_ref[:, sl]                                       # (D, inner)
        rhs = jnp.concatenate([x, x * x], axis=0)                  # (2D, inner)
        mm = jnp.dot(wblk, rhs, preferred_element_type=jnp.float32)  # (8+2K, inner)

        # ---- sparse side: single pass over fields --------------------------
        # acc  = sum_f v_f        acc2 = sum_f v_f^2   (both f32, same load)
        acc = jnp.zeros((K, inner), jnp.float32)
        acc2 = jnp.zeros((K, inner), jnp.float32)
        for f in range(F):
            v = s_emb_ref[f, :, sl].astype(jnp.float32)            # (K, inner)
            acc = acc + v
            acc2 = acc2 + v * v

        summed = acc + mm[8:8 + K, :]                              # (K, inner)
        sq_sum = acc2 + mm[8 + K:8 + 2 * K, :]                     # (K, inner)
        y2 = 0.5 * jnp.sum(summed * summed - sq_sum,
                           axis=0, keepdims=True)                  # (1, inner)

        y1 = (jnp.sum(s_one_ref[:, sl].astype(jnp.float32),
                      axis=0, keepdims=True)
              + mm[0:1, :])                                        # (1, inner)

        out_ref[:, sl] = jnp.concatenate([y1, y2], axis=0)         # (2, inner)


def _pick_tb(batch):
    """Large lane-aligned batch tile; prefer an even grid of >= 2 steps."""
    for cand in (4096, 2048, 1024, 512, 256, 128):
        if batch % cand == 0 and batch // cand >= 2 and (batch // cand) % 2 == 0:
            return cand
    for cand in (4096, 2048, 1024, 512, 256, 128):
        if batch % cand == 0 and batch // cand >= 2:
            return cand
    if batch % 128 == 0:
        return min(batch, 4096)
    return batch  # tiny/odd batch: single full-extent tile


def fm_forward(sparse_inputs, dense_inputs, params, *, tb=None):
    """Pallas FM forward. sparse_inputs: (B, S) int32, dense_inputs: (B, D) int32."""
    emb_one_tbl = params["embedding_one"]       # (N, 1)
    emb_tbl = params["embedding"]               # (N, K)
    dense_w_one = params["dense_w_one"]         # (D,)
    dense_w = params["dense_w"]                 # (1, D, K)

    B, D = dense_inputs.shape
    K = emb_tbl.shape[1]

    concat_idx = jnp.concatenate([sparse_inputs, dense_inputs], axis=1)   # (B, F)
    F = concat_idx.shape[1]

    # Contiguous row-gathers in the wrapper; stream to the kernel in bf16 with
    # batch on the lane axis. (See TODO(synk) at top re: in-kernel gather.)
    g_one = jnp.take(emb_one_tbl[:, 0], concat_idx, axis=0)               # (B, F)
    s_one = g_one.astype(jnp.bfloat16).T                                  # (F, B)
    g_emb = jnp.take(emb_tbl, concat_idx, axis=0)                         # (B, F, K)
    s_emb = jnp.transpose(g_emb.astype(jnp.bfloat16), (1, 2, 0))          # (F, K, B)
    dense_f = dense_inputs.astype(jnp.float32).T                          # (D, B)

    # Merged dense-side weight block (built once; includes W^T * W^T).
    dwt = dense_w.reshape(D, K).T.astype(jnp.float32)                     # (K, D)
    R = 8 + 2 * K
    wblk = jnp.zeros((R, 2 * D), jnp.float32)
    wblk = wblk.at[0, :D].set(dense_w_one.astype(jnp.float32))
    wblk = wblk.at[8:8 + K, :D].set(dwt)
    wblk = wblk.at[8 + K:, D:].set(dwt * dwt)

    if tb is None:
        tb = _pick_tb(B)
    assert B % tb == 0, (B, tb)

    # Honest VMEM sizing: double-buffered streamed blocks + weights + headroom.
    bytes_per_step = F * K * tb * 2 + F * tb * 2 + D * tb * 4 + 2 * tb * 4
    vmem_limit = int(min(max(3 * bytes_per_step + R * 2 * D * 4 + (4 << 20),
                             16 << 20), 64 << 20))

    out = pl.pallas_call(
        fm_kernel,
        out_shape=jax.ShapeDtypeStruct((2, B), jnp.float32),
        grid=(B // tb,),
        in_specs=[
            pl.BlockSpec((F, tb), lambda i: (0, i)),          # s_one   (F, B)
            pl.BlockSpec((F, K, tb), lambda i: (0, 0, i)),    # s_emb   (F, K, B)
            pl.BlockSpec((D, tb), lambda i: (0, i)),          # dense   (D, B)
            pl.BlockSpec(memory_space=pltpu.MemorySpace.VMEM),  # wblk, untiled
        ],
        out_specs=pl.BlockSpec((2, tb), lambda i: (0, i)),    # lane-dense (2, B)
        compiler_params=pltpu.CompilerParams(
            dimension_semantics=("parallel",),
            vmem_limit_bytes=vmem_limit,
        ),
    )(s_one, s_emb, dense_f, wblk)

    return out[0].reshape(B, 1), out[1].reshape(B, 1)


def fm_reference(sparse_inputs, dense_inputs, params):
    """Pure-JAX transcription of the PyTorch forward (for verification)."""
    emb_one = params["embedding_one"]
    emb = params["embedding"]
    dense_w_one = params["dense_w_one"]
    dense_w = params["dense_w"]

    concat_idx = jnp.concatenate([sparse_inputs, dense_inputs], axis=1)
    sparse_emb_one = emb_one[concat_idx]                                   # (B, F, 1)
    dense_emb_one = dense_inputs.astype(jnp.float32) * dense_w_one         # (B, D)
    dense_emb_one = dense_emb_one[:, :, None]                              # (B, D, 1)
    y_first = jnp.sum(sparse_emb_one, axis=1) + jnp.sum(dense_emb_one, axis=1)

    sparse_embeddings = emb[concat_idx]                                    # (B, F, K)
    dense_inputs_re = dense_inputs.astype(jnp.float32)[:, :, None]         # (B, D, 1)
    dense_embeddings = dense_inputs_re * dense_w                           # (B, D, K)
    feat = jnp.concatenate([sparse_embeddings, dense_embeddings], axis=1)  # (B, F+D, K)
    summed = jnp.sum(feat, axis=1)
    y_second = 0.5 * jnp.sum(summed * summed - jnp.sum(feat * feat, axis=1),
                             axis=1, keepdims=True)
    return y_first, y_second


if __name__ == "__main__":
    # Small, Criteo-like hyper-parameters (shapes from FM.__init__).
    sparse_feature_number = 1000
    sparse_feature_dim = 16          # K (== dense_emb_dim)
    dense_feature_dim = 13           # D
    sparse_num_field = 26            # S
    B = 256                          # -> tb=128, grid=(2,), exercises tiling

    key = jax.random.PRNGKey(0)
    k_e1, k_e, k_s, k_d = jax.random.split(key, 4)

    params = {
        "embedding_one": jax.random.normal(
            k_e1, (sparse_feature_number, 1), dtype=jnp.float32),
        "embedding": jax.random.normal(
            k_e, (sparse_feature_number, sparse_feature_dim), dtype=jnp.float32),
        "dense_w_one": jnp.ones((dense_feature_dim,), dtype=jnp.float32),
        "dense_w": jnp.ones((1, dense_feature_dim, sparse_feature_dim),
                            dtype=jnp.float32),
    }

    # Both inputs are integer (the torch.concat result is used as embedding
    # indices); dense values also act as raw dense features.
    sparse_inputs = jax.random.randint(
        k_s, (B, sparse_num_field), 0, sparse_feature_number, dtype=jnp.int32)
    dense_inputs = jax.random.randint(
        k_d, (B, dense_feature_dim), 0, 50, dtype=jnp.int32)

    y1, y2 = jax.jit(fm_forward)(sparse_inputs, dense_inputs, params)
    y1, y2 = jax.block_until_ready((y1, y2))

    y1_ref, y2_ref = fm_reference(sparse_inputs, dense_inputs, params)
    # bf16 embedding streaming -> slightly loosened tolerances (reductions f32).
    np.testing.assert_allclose(np.asarray(y1), np.asarray(y1_ref),
                               rtol=1e-2, atol=0.5)
    np.testing.assert_allclose(np.asarray(y2), np.asarray(y2_ref),
                               rtol=1e-2, atol=2.0)

    print("KERNEL_OK")
</pallas_src>

<mosaic_0001>
module attributes {stable_mosaic.version = 11 : i64} {
  func.func @fm_kernel(%arg0: i32, %arg1: memref<39x128xbf16, #tpu.memory_space<vmem>>, %arg2: memref<39x16x128xbf16, #tpu.memory_space<vmem>>, %arg3: memref<13x128xf32, #tpu.memory_space<vmem>>, %arg4: memref<40x26xf32, #tpu.memory_space<vmem>>, %arg5: memref<2x128xf32, #tpu.memory_space<vmem>>) attributes {dimension_semantics = [#tpu.dimension_semantics<parallel>], iteration_bounds = array<i64: 2>, scalar_prefetch = 0 : i64, scratch_operands = 0 : i64, tpu.core_type = #tpu.core_type<tc>, window_params = [{transform_indices = @transform_0, window_bounds = array<i64: 39, 128>}, {transform_indices = @transform_1, window_bounds = array<i64: 39, 16, 128>}, {transform_indices = @transform_2, window_bounds = array<i64: 13, 128>}, {pipeline_mode = #tpu.pipeline_mode<synchronous>, transform_indices = @transform_3, window_bounds = array<i64: 40, 26>}, {transform_indices = @transform_4, window_bounds = array<i64: 2, 128>}]} {
    %c0 = arith.constant 0 : index
    %c0_0 = arith.constant 0 : index
    %0 = vector.load %arg4[%c0, %c0_0] : memref<40x26xf32, #tpu.memory_space<vmem>>, vector<40x26xf32>
    %c0_1 = arith.constant 0 : index
    %c0_2 = arith.constant 0 : index
    %1 = vector.load %arg3[%c0_1, %c0_2] : memref<13x128xf32, #tpu.memory_space<vmem>>, vector<13x128xf32>
    %2 = arith.mulf %1, %1 : vector<13x128xf32>
    %3 = tpu.concatenate %1, %2 in 0 : vector<13x128xf32>, vector<13x128xf32> -> vector<26x128xf32>
    %cst = arith.constant dense<0.000000e+00> : vector<40x128xf32>
    %4 = tpu.matmul %0, %3, %cst {dimension_numbers = #tpu.dot_dimension_numbers<[1], [0], [0], [1], [0, 0, 1, 1], [], []>} : vector<40x26xf32>, vector<26x128xf32>, vector<40x128xf32> -> vector<40x128xf32>
    %cst_3 = arith.constant 0.000000e+00 : f32
    %5 = vector.broadcast %cst_3 : f32 to vector<16x128xf32>
    %cst_4 = arith.constant 0.000000e+00 : f32
    %6 = vector.broadcast %cst_4 : f32 to vector<16x128xf32>
    %c0_5 = arith.constant 0 : index
    %c0_6 = arith.constant 0 : index
    %c0_7 = arith.constant 0 : index
    %7 = vector.load %arg2[%c0_5, %c0_6, %c0_7] : memref<39x16x128xbf16, #tpu.memory_space<vmem>>, vector<1x16x128xbf16>
    %8 = vector.shape_cast %7 : vector<1x16x128xbf16> to vector<16x128xbf16>
    %9 = arith.extf %8 : vector<16x128xbf16> to vector<16x128xf32>
    %10 = arith.addf %5, %9 : vector<16x128xf32>
    %11 = arith.mulf %9, %9 : vector<16x128xf32>
    %12 = arith.addf %6, %11 : vector<16x128xf32>
    %c1 = arith.constant 1 : index
    %c0_8 = arith.constant 0 : index
    %c0_9 = arith.constant 0 : index
    %13 = vector.load %arg2[%c1, %c0_8, %c0_9] : memref<39x16x128xbf16, #tpu.memory_space<vmem>>, vector<1x16x128xbf16>
    %14 = vector.shape_cast %13 : vector<1x16x128xbf16> to vector<16x128xbf16>
    %15 = arith.extf %14 : vector<16x128xbf16> to vector<16x128xf32>
    %16 = arith.addf %10, %15 : vector<16x128xf32>
    %17 = arith.mulf %15, %15 : vector<16x128xf32>
    %18 = arith.addf %12, %17 : vector<16x128xf32>
    %c2 = arith.constant 2 : index
    %c0_10 = arith.constant 0 : index
    %c0_11 = arith.constant 0 : index
    %19 = vector.load %arg2[%c2, %c0_10, %c0_11] : memref<39x16x128xbf16, #tpu.memory_space<vmem>>, vector<1x16x128xbf16>
    %20 = vector.shape_cast %19 : vector<1x16x128xbf16> to vector<16x128xbf16>
    %21 = arith.extf %20 : vector<16x128xbf16> to vector<16x128xf32>
    %22 = arith.addf %16, %21 : vector<16x128xf32>
    %23 = arith.mulf %21, %21 : vector<16x128xf32>
    %24 = arith.addf %18, %23 : vector<16x128xf32>
    %c3 = arith.constant 3 : index
    %c0_12 = arith.constant 0 : index
    %c0_13 = arith.constant 0 : index
    %25 = vector.load %arg2[%c3, %c0_12, %c0_13] : memref<39x16x128xbf16, #tpu.memory_space<vmem>>, vector<1x16x128xbf16>
    %26 = vector.shape_cast %25 : vector<1x16x128xbf16> to vector<16x128xbf16>
    %27 = arith.extf %26 : vector<16x128xbf16> to vector<16x128xf32>
    %28 = arith.addf %22, %27 : vector<16x128xf32>
    %29 = arith.mulf %27, %27 : vector<16x128xf32>
    %30 = arith.addf %24, %29 : vector<16x128xf32>
    %c4 = arith.constant 4 : index
    %c0_14 = arith.constant 0 : index
    %c0_15 = arith.constant 0 : index
    %31 = vector.load %arg2[%c4, %c0_14, %c0_15] : memref<39x16x128xbf16, #tpu.memory_space<vmem>>, vector<1x16x128xbf16>
    %32 = vector.shape_cast %31 : vector<1x16x128xbf16> to vector<16x128xbf16>
    %33 = arith.extf %32 : vector<16x128xbf16> to vector<16x128xf32>
    %34 = arith.addf %28, %33 : vector<16x128xf32>
    %35 = arith.mulf %33, %33 : vector<16x128xf32>
    %36 = arith.addf %30, %35 : vector<16x128xf32>
    %c5 = arith.constant 5 : index
    %c0_16 = arith.constant 0 : index
    %c0_17 = arith.constant 0 : index
    %37 = vector.load %arg2[%c5, %c0_16, %c0_17] : memref<39x16x128xbf16, #tpu.memory_space<vmem>>, vector<1x16x128xbf16>
    %38 = vector.shape_cast %37 : vector<1x16x128xbf16> to vector<16x128xbf16>
    %39 = arith.extf %38 : vector<16x128xbf16> to vector<16x128xf32>
    %40 = arith.addf %34, %39 : vector<16x128xf32>
    %41 = arith.mulf %39, %39 : vector<16x128xf32>
    %42 = arith.addf %36, %41 : vector<16x128xf32>
    %c6 = arith.constant 6 : index
    %c0_18 = arith.constant 0 : index
    %c0_19 = arith.constant 0 : index
    %43 = vector.load %arg2[%c6, %c0_18, %c0_19] : memref<39x16x128xbf16, #tpu.memory_space<vmem>>, vector<1x16x128xbf16>
    %44 = vector.shape_cast %43 : vector<1x16x128xbf16> to vector<16x128xbf16>
    %45 = arith.extf %44 : vector<16x128xbf16> to vector<16x128xf32>
    %46 = arith.addf %40, %45 : vector<16x128xf32>
    %47 = arith.mulf %45, %45 : vector<16x128xf32>
    %48 = arith.addf %42, %47 : vector<16x128xf32>
    %c7 = arith.constant 7 : index
    %c0_20 = arith.constant 0 : index
    %c0_21 = arith.constant 0 : index
    %49 = vector.load %arg2[%c7, %c0_20, %c0_21] : memref<39x16x128xbf16, #tpu.memory_space<vmem>>, vector<1x16x128xbf16>
    %50 = vector.shape_cast %49 : vector<1x16x128xbf16> to vector<16x128xbf16>
    %51 = arith.extf %50 : vector<16x128xbf16> to vector<16x128xf32>
    %52 = arith.addf %46, %51 : vector<16x128xf32>
    %53 = arith.mulf %51, %51 : vector<16x128xf32>
    %54 = arith.addf %48, %53 : vector<16x128xf32>
    %c8 = arith.constant 8 : index
    %c0_22 = arith.constant 0 : index
    %c0_23 = arith.constant 0 : index
    %55 = vector.load %arg2[%c8, %c0_22, %c0_23] : memref<39x16x128xbf16, #tpu.memory_space<vmem>>, vector<1x16x128xbf16>
    %56 = vector.shape_cast %55 : vector<1x16x128xbf16> to vector<16x128xbf16>
    %57 = arith.extf %56 : vector<16x128xbf16> to vector<16x128xf32>
    %58 = arith.addf %52, %57 : vector<16x128xf32>
    %59 = arith.mulf %57, %57 : vector<16x128xf32>
    %60 = arith.addf %54, %59 : vector<16x128xf32>
    %c9 = arith.constant 9 : index
    %c0_24 = arith.constant 0 : index
    %c0_25 = arith.constant 0 : index
    %61 = vector.load %arg2[%c9, %c0_24, %c0_25] : memref<39x16x128xbf16, #tpu.memory_space<vmem>>, vector<1x16x128xbf16>
    %62 = vector.shape_cast %61 : vector<1x16x128xbf16> to vector<16x128xbf16>
    %63 = arith.extf %62 : vector<16x128xbf16> to vector<16x128xf32>
    %64 = arith.addf %58, %63 : vector<16x128xf32>
    %65 = arith.mulf %63, %63 : vector<16x128xf32>
    %66 = arith.addf %60, %65 : vector<16x128xf32>
    %c10 = arith.constant 10 : index
    %c0_26 = arith.constant 0 : index
    %c0_27 = arith.constant 0 : index
    %67 = vector.load %arg2[%c10, %c0_26, %c0_27] : memref<39x16x128xbf16, #tpu.memory_space<vmem>>, vector<1x16x128xbf16>
    %68 = vector.shape_cast %67 : vector<1x16x128xbf16> to vector<16x128xbf16>
    %69 = arith.extf %68 : vector<16x128xbf16> to vector<16x128xf32>
    %70 = arith.addf %64, %69 : vector<16x128xf32>
    %71 = arith.mulf %69, %69 : vector<16x128xf32>
    %72 = arith.addf %66, %71 : vector<16x128xf32>
    %c11 = arith.constant 11 : index
    %c0_28 = arith.constant 0 : index
    %c0_29 = arith.constant 0 : index
    %73 = vector.load %arg2[%c11, %c0_28, %c0_29] : memref<39x16x128xbf16, #tpu.memory_space<vmem>>, vector<1x16x128xbf16>
    %74 = vector.shape_cast %73 : vector<1x16x128xbf16> to vector<16x128xbf16>
    %75 = arith.extf %74 : vector<16x128xbf16> to vector<16x128xf32>
    %76 = arith.addf %70, %75 : vector<16x128xf32>
    %77 = arith.mulf %75, %75 : vector<16x128xf32>
    %78 = arith.addf %72, %77 : vector<16x128xf32>
    %c12 = arith.constant 12 : index
    %c0_30 = arith.constant 0 : index
    %c0_31 = arith.constant 0 : index
    %79 = vector.load %arg2[%c12, %c0_30, %c0_31] : memref<39x16x128xbf16, #tpu.memory_space<vmem>>, vector<1x16x128xbf16>
    %80 = vector.shape_cast %79 : vector<1x16x128xbf16> to vector<16x128xbf16>
    %81 = arith.extf %80 : vector<16x128xbf16> to vector<16x128xf32>
    %82 = arith.addf %76, %81 : vector<16x128xf32>
    %83 = arith.mulf %81, %81 : vector<16x128xf32>
    %84 = arith.addf %78, %83 : vector<16x128xf32>
    %c13 = arith.constant 13 : index
    %c0_32 = arith.constant 0 : index
    %c0_33 = arith.constant 0 : index
    %85 = vector.load %arg2[%c13, %c0_32, %c0_33] : memref<39x16x128xbf16, #tpu.memory_space<vmem>>, vector<1x16x128xbf16>
    %86 = vector.shape_cast %85 : vector<1x16x128xbf16> to vector<16x128xbf16>
    %87 = arith.extf %86 : vector<16x128xbf16> to vector<16x128xf32>
    %88 = arith.addf %82, %87 : vector<16x128xf32>
    %89 = arith.mulf %87, %87 : vector<16x128xf32>
    %90 = arith.addf %84, %89 : vector<16x128xf32>
    %c14 = arith.constant 14 : index
    %c0_34 = arith.constant 0 : index
    %c0_35 = arith.constant 0 : index
    %91 = vector.load %arg2[%c14, %c0_34, %c0_35] : memref<39x16x128xbf16, #tpu.memory_space<vmem>>, vector<1x16x128xbf16>
    %92 = vector.shape_cast %91 : vector<1x16x128xbf16> to vector<16x128xbf16>
    %93 = arith.extf %92 : vector<16x128xbf16> to vector<16x128xf32>
    %94 = arith.addf %88, %93 : vector<16x128xf32>
    %95 = arith.mulf %93, %93 : vector<16x128xf32>
    %96 = arith.addf %90, %95 : vector<16x128xf32>
    %c15 = arith.constant 15 : index
    %c0_36 = arith.constant 0 : index
    %c0_37 = arith.constant 0 : index
    %97 = vector.load %arg2[%c15, %c0_36, %c0_37] : memref<39x16x128xbf16, #tpu.memory_space<vmem>>, vector<1x16x128xbf16>
    %98 = vector.shape_cast %97 : vector<1x16x128xbf16> to vector<16x128xbf16>
    %99 = arith.extf %98 : vector<16x128xbf16> to vector<16x128xf32>
    %100 = arith.addf %94, %99 : vector<16x128xf32>
    %101 = arith.mulf %99, %99 : vector<16x128xf32>
    %102 = arith.addf %96, %101 : vector<16x128xf32>
    %c16 = arith.constant 16 : index
    %c0_38 = arith.constant 0 : index
    %c0_39 = arith.constant 0 : index
    %103 = vector.load %arg2[%c16, %c0_38, %c0_39] : memref<39x16x128xbf16, #tpu.memory_space<vmem>>, vector<1x16x128xbf16>
    %104 = vector.shape_cast %103 : vector<1x16x128xbf16> to vector<16x128xbf16>
    %105 = arith.extf %104 : vector<16x128xbf16> to vector<16x128xf32>
    %106 = arith.addf %100, %105 : vector<16x128xf32>
    %107 = arith.mulf %105, %105 : vector<16x128xf32>
    %108 = arith.addf %102, %107 : vector<16x128xf32>
    %c17 = arith.constant 17 : index
    %c0_40 = arith.constant 0 : index
    %c0_41 = arith.constant 0 : index
    %109 = vector.load %arg2[%c17, %c0_40, %c0_41] : memref<39x16x128xbf16, #tpu.memory_space<vmem>>, vector<1x16x128xbf16>
    %110 = vector.shape_cast %109 : vector<1x16x128xbf16> to vector<16x128xbf16>
    %111 = arith.extf %110 : vector<16x128xbf16> to vector<16x128xf32>
    %112 = arith.addf %106, %111 : vector<16x128xf32>
    %113 = arith.mulf %111, %111 : vector<16x128xf32>
    %114 = arith.addf %108, %113 : vector<16x128xf32>
    %c18 = arith.constant 18 : index
    %c0_42 = arith.constant 0 : index
    %c0_43 = arith.constant 0 : index
    %115 = vector.load %arg2[%c18, %c0_42, %c0_43] : memref<39x16x128xbf16, #tpu.memory_space<vmem>>, vector<1x16x128xbf16>
    %116 = vector.shape_cast %115 : vector<1x16x128xbf16> to vector<16x128xbf16>
    %117 = arith.extf %116 : vector<16x128xbf16> to vector<16x128xf32>
    %118 = arith.addf %112, %117 : vector<16x128xf32>
    %119 = arith.mulf %117, %117 : vector<16x128xf32>
    %120 = arith.addf %114, %119 : vector<16x128xf32>
    %c19 = arith.constant 19 : index
    %c0_44 = arith.constant 0 : index
    %c0_45 = arith.constant 0 : index
    %121 = vector.load %arg2[%c19, %c0_44, %c0_45] : memref<39x16x128xbf16, #tpu.memory_space<vmem>>, vector<1x16x128xbf16>
    %122 = vector.shape_cast %121 : vector<1x16x128xbf16> to vector<16x128xbf16>
    %123 = arith.extf %122 : vector<16x128xbf16> to vector<16x128xf32>
    %124 = arith.addf %118, %123 : vector<16x128xf32>
    %125 = arith.mulf %123, %123 : vector<16x128xf32>
    %126 = arith.addf %120, %125 : vector<16x128xf32>
    %c20 = arith.constant 20 : index
    %c0_46 = arith.constant 0 : index
    %c0_47 = arith.constant 0 : index
    %127 = vector.load %arg2[%c20, %c0_46, %c0_47] : memref<39x16x128xbf16, #tpu.memory_space<vmem>>, vector<1x16x128xbf16>
    %128 = vector.shape_cast %127 : vector<1x16x128xbf16> to vector<16x128xbf16>
    %129 = arith.extf %128 : vector<16x128xbf16> to vector<16x128xf32>
    %130 = arith.addf %124, %129 : vector<16x128xf32>
    %131 = arith.mulf %129, %129 : vector<16x128xf32>
    %132 = arith.addf %126, %131 : vector<16x128xf32>
    %c21 = arith.constant 21 : index
    %c0_48 = arith.constant 0 : index
    %c0_49 = arith.constant 0 : index
    %133 = vector.load %arg2[%c21, %c0_48, %c0_49] : memref<39x16x128xbf16, #tpu.memory_space<vmem>>, vector<1x16x128xbf16>
    %134 = vector.shape_cast %133 : vector<1x16x128xbf16> to vector<16x128xbf16>
    %135 = arith.extf %134 : vector<16x128xbf16> to vector<16x128xf32>
    %136 = arith.addf %130, %135 : vector<16x128xf32>
    %137 = arith.mulf %135, %135 : vector<16x128xf32>
    %138 = arith.addf %132, %137 : vector<16x128xf32>
    %c22 = arith.constant 22 : index
    %c0_50 = arith.constant 0 : index
    %c0_51 = arith.constant 0 : index
    %139 = vector.load %arg2[%c22, %c0_50, %c0_51] : memref<39x16x128xbf16, #tpu.memory_space<vmem>>, vector<1x16x128xbf16>
    %140 = vector.shape_cast %139 : vector<1x16x128xbf16> to vector<16x128xbf16>
    %141 = arith.extf %140 : vector<16x128xbf16> to vector<16x128xf32>
    %142 = arith.addf %136, %141 : vector<16x128xf32>
    %143 = arith.mulf %141, %141 : vector<16x128xf32>
    %144 = arith.addf %138, %143 : vector<16x128xf32>
    %c23 = arith.constant 23 : index
    %c0_52 = arith.constant 0 : index
    %c0_53 = arith.constant 0 : index
    %145 = vector.load %arg2[%c23, %c0_52, %c0_53] : memref<39x16x128xbf16, #tpu.memory_space<vmem>>, vector<1x16x128xbf16>
    %146 = vector.shape_cast %145 : vector<1x16x128xbf16> to vector<16x128xbf16>
    %147 = arith.extf %146 : vector<16x128xbf16> to vector<16x128xf32>
    %148 = arith.addf %142, %147 : vector<16x128xf32>
    %149 = arith.mulf %147, %147 : vector<16x128xf32>
    %150 = arith.addf %144, %149 : vector<16x128xf32>
    %c24 = arith.constant 24 : index
    %c0_54 = arith.constant 0 : index
    %c0_55 = arith.constant 0 : index
    %151 = vector.load %arg2[%c24, %c0_54, %c0_55] : memref<39x16x128xbf16, #tpu.memory_space<vmem>>, vector<1x16x128xbf16>
    %152 = vector.shape_cast %151 : vector<1x16x128xbf16> to vector<16x128xbf16>
    %153 = arith.extf %152 : vector<16x128xbf16> to vector<16x128xf32>
    %154 = arith.addf %148, %153 : vector<16x128xf32>
    %155 = arith.mulf %153, %153 : vector<16x128xf32>
    %156 = arith.addf %150, %155 : vector<16x128xf32>
    %c25 = arith.constant 25 : index
    %c0_56 = arith.constant 0 : index
    %c0_57 = arith.constant 0 : index
    %157 = vector.load %arg2[%c25, %c0_56, %c0_57] : memref<39x16x128xbf16, #tpu.memory_space<vmem>>, vector<1x16x128xbf16>
    %158 = vector.shape_cast %157 : vector<1x16x128xbf16> to vector<16x128xbf16>
    %159 = arith.extf %158 : vector<16x128xbf16> to vector<16x128xf32>
    %160 = arith.addf %154, %159 : vector<16x128xf32>
    %161 = arith.mulf %159, %159 : vector<16x128xf32>
    %162 = arith.addf %156, %161 : vector<16x128xf32>
    %c26 = arith.constant 26 : index
    %c0_58 = arith.constant 0 : index
    %c0_59 = arith.constant 0 : index
    %163 = vector.load %arg2[%c26, %c0_58, %c0_59] : memref<39x16x128xbf16, #tpu.memory_space<vmem>>, vector<1x16x128xbf16>
    %164 = vector.shape_cast %163 : vector<1x16x128xbf16> to vector<16x128xbf16>
    %165 = arith.extf %164 : vector<16x128xbf16> to vector<16x128xf32>
    %166 = arith.addf %160, %165 : vector<16x128xf32>
    %167 = arith.mulf %165, %165 : vector<16x128xf32>
    %168 = arith.addf %162, %167 : vector<16x128xf32>
    %c27 = arith.constant 27 : index
    %c0_60 = arith.constant 0 : index
    %c0_61 = arith.constant 0 : index
    %169 = vector.load %arg2[%c27, %c0_60, %c0_61] : memref<39x16x128xbf16, #tpu.memory_space<vmem>>, vector<1x16x128xbf16>
    %170 = vector.shape_cast %169 : vector<1x16x128xbf16> to vector<16x128xbf16>
    %171 = arith.extf %170 : vector<16x128xbf16> to vector<16x128xf32>
    %172 = arith.addf %166, %171 : vector<16x128xf32>
    %173 = arith.mulf %171, %171 : vector<16x128xf32>
    %174 = arith.addf %168, %173 : vector<16x128xf32>
    %c28 = arith.constant 28 : index
    %c0_62 = arith.constant 0 : index
    %c0_63 = arith.constant 0 : index
    %175 = vector.load %arg2[%c28, %c0_62, %c0_63] : memref<39x16x128xbf16, #tpu.memory_space<vmem>>, vector<1x16x128xbf16>
    %176 = vector.shape_cast %175 : vector<1x16x128xbf16> to vector<16x128xbf16>
    %177 = arith.extf %176 : vector<16x128xbf16> to vector<16x128xf32>
    %178 = arith.addf %172, %177 : vector<16x128xf32>
    %179 = arith.mulf %177, %177 : vector<16x128xf32>
    %180 = arith.addf %174, %179 : vector<16x128xf32>
    %c29 = arith.constant 29 : index
    %c0_64 = arith.constant 0 : index
    %c0_65 = arith.constant 0 : index
    %181 = vector.load %arg2[%c29, %c0_64, %c0_65] : memref<39x16x128xbf16, #tpu.memory_space<vmem>>, vector<1x16x128xbf16>
    %182 = vector.shape_cast %181 : vector<1x16x128xbf16> to vector<16x128xbf16>
    %183 = arith.extf %182 : vector<16x128xbf16> to vector<16x128xf32>
    %184 = arith.addf %178, %183 : vector<16x128xf32>
    %185 = arith.mulf %183, %183 : vector<16x128xf32>
    %186 = arith.addf %180, %185 : vector<16x128xf32>
    %c30 = arith.constant 30 : index
    %c0_66 = arith.constant 0 : index
    %c0_67 = arith.constant 0 : index
    %187 = vector.load %arg2[%c30, %c0_66, %c0_67] : memref<39x16x128xbf16, #tpu.memory_space<vmem>>, vector<1x16x128xbf16>
    %188 = vector.shape_cast %187 : vector<1x16x128xbf16> to vector<16x128xbf16>
    %189 = arith.extf %188 : vector<16x128xbf16> to vector<16x128xf32>
    %190 = arith.addf %184, %189 : vector<16x128xf32>
    %191 = arith.mulf %189, %189 : vector<16x128xf32>
    %192 = arith.addf %186, %191 : vector<16x128xf32>
    %c31 = arith.constant 31 : index
    %c0_68 = arith.constant 0 : index
    %c0_69 = arith.constant 0 : index
    %193 = vector.load %arg2[%c31, %c0_68, %c0_69] : memref<39x16x128xbf16, #tpu.memory_space<vmem>>, vector<1x16x128xbf16>
    %194 = vector.shape_cast %193 : vector<1x16x128xbf16> to vector<16x128xbf16>
    %195 = arith.extf %194 : vector<16x128xbf16> to vector<16x128xf32>
    %196 = arith.addf %190, %195 : vector<16x128xf32>
    %197 = arith.mulf %195, %195 : vector<16x128xf32>
    %198 = arith.addf %192, %197 : vector<16x128xf32>
    %c32 = arith.constant 32 : index
    %c0_70 = arith.constant 0 : index
    %c0_71 = arith.constant 0 : index
    %199 = vector.load %arg2[%c32, %c0_70, %c0_71] : memref<39x16x128xbf16, #tpu.memory_space<vmem>>, vector<1x16x128xbf16>
    %200 = vector.shape_cast %199 : vector<1x16x128xbf16> to vector<16x128xbf16>
    %201 = arith.extf %200 : vector<16x128xbf16> to vector<16x128xf32>
    %202 = arith.addf %196, %201 : vector<16x128xf32>
    %203 = arith.mulf %201, %201 : vector<16x128xf32>
    %204 = arith.addf %198, %203 : vector<16x128xf32>
    %c33 = arith.constant 33 : index
    %c0_72 = arith.constant 0 : index
    %c0_73 = arith.constant 0 : index
    %205 = vector.load %arg2[%c33, %c0_72, %c0_73] : memref<39x16x128xbf16, #tpu.memory_space<vmem>>, vector<1x16x128xbf16>
    %206 = vector.shape_cast %205 : vector<1x16x128xbf16> to vector<16x128xbf16>
    %207 = arith.extf %206 : vector<16x128xbf16> to vector<16x128xf32>
    %208 = arith.addf %202, %207 : vector<16x128xf32>
    %209 = arith.mulf %207, %207 : vector<16x128xf32>
    %210 = arith.addf %204, %209 : vector<16x128xf32>
    %c34 = arith.constant 34 : index
    %c0_74 = arith.constant 0 : index
    %c0_75 = arith.constant 0 : index
    %211 = vector.load %arg2[%c34, %c0_74, %c0_75] : memref<39x16x128xbf16, #tpu.memory_space<vmem>>, vector<1x16x128xbf16>
    %212 = vector.shape_cast %211 : vector<1x16x128xbf16> to vector<16x128xbf16>
    %213 = arith.extf %212 : vector<16x128xbf16> to vector<16x128xf32>
    %214 = arith.addf %208, %213 : vector<16x128xf32>
    %215 = arith.mulf %213, %213 : vector<16x128xf32>
    %216 = arith.addf %210, %215 : vector<16x128xf32>
    %c35 = arith.constant 35 : index
    %c0_76 = arith.constant 0 : index
    %c0_77 = arith.constant 0 : index
    %217 = vector.load %arg2[%c35, %c0_76, %c0_77] : memref<39x16x128xbf16, #tpu.memory_space<vmem>>, vector<1x16x128xbf16>
    %218 = vector.shape_cast %217 : vector<1x16x128xbf16> to vector<16x128xbf16>
    %219 = arith.extf %218 : vector<16x128xbf16> to vector<16x128xf32>
    %220 = arith.addf %214, %219 : vector<16x128xf32>
    %221 = arith.mulf %219, %219 : vector<16x128xf32>
    %222 = arith.addf %216, %221 : vector<16x128xf32>
    %c36 = arith.constant 36 : index
    %c0_78 = arith.constant 0 : index
    %c0_79 = arith.constant 0 : index
    %223 = vector.load %arg2[%c36, %c0_78, %c0_79] : memref<39x16x128xbf16, #tpu.memory_space<vmem>>, vector<1x16x128xbf16>
    %224 = vector.shape_cast %223 : vector<1x16x128xbf16> to vector<16x128xbf16>
    %225 = arith.extf %224 : vector<16x128xbf16> to vector<16x128xf32>
    %226 = arith.addf %220, %225 : vector<16x128xf32>
    %227 = arith.mulf %225, %225 : vector<16x128xf32>
    %228 = arith.addf %222, %227 : vector<16x128xf32>
    %c37 = arith.constant 37 : index
    %c0_80 = arith.constant 0 : index
    %c0_81 = arith.constant 0 : index
    %229 = vector.load %arg2[%c37, %c0_80, %c0_81] : memref<39x16x128xbf16, #tpu.memory_space<vmem>>, vector<1x16x128xbf16>
    %230 = vector.shape_cast %229 : vector<1x16x128xbf16> to vector<16x128xbf16>
    %231 = arith.extf %230 : vector<16x128xbf16> to vector<16x128xf32>
    %232 = arith.addf %226, %231 : vector<16x128xf32>
    %233 = arith.mulf %231, %231 : vector<16x128xf32>
    %234 = arith.addf %228, %233 : vector<16x128xf32>
    %c38 = arith.constant 38 : index
    %c0_82 = arith.constant 0 : index
    %c0_83 = arith.constant 0 : index
    %235 = vector.load %arg2[%c38, %c0_82, %c0_83] : memref<39x16x128xbf16, #tpu.memory_space<vmem>>, vector<1x16x128xbf16>
    %236 = vector.shape_cast %235 : vector<1x16x128xbf16> to vector<16x128xbf16>
    %237 = arith.extf %236 : vector<16x128xbf16> to vector<16x128xf32>
    %238 = arith.addf %232, %237 : vector<16x128xf32>
    %239 = arith.mulf %237, %237 : vector<16x128xf32>
    %240 = arith.addf %234, %239 : vector<16x128xf32>
    %241 = vector.extract_strided_slice %4 {offsets = [8, 0], sizes = [16, 128], strides = [1, 1]} : vector<40x128xf32> to vector<16x128xf32>
    %242 = arith.addf %238, %241 : vector<16x128xf32>
    %243 = vector.extract_strided_slice %4 {offsets = [24, 0], sizes = [16, 128], strides = [1, 1]} : vector<40x128xf32> to vector<16x128xf32>
    %244 = arith.addf %240, %243 : vector<16x128xf32>
    %245 = arith.mulf %242, %242 : vector<16x128xf32>
    %246 = arith.subf %245, %244 : vector<16x128xf32>
    %cst_84 = arith.constant dense<0.000000e+00> : vector<128xf32>
    %247 = vector.multi_reduction <add>, %246, %cst_84 [0] : vector<16x128xf32> to vector<128xf32>
    %248 = vector.shape_cast %247 : vector<128xf32> to vector<1x128xf32>
    %cst_85 = arith.constant 5.000000e-01 : f32
    %249 = vector.broadcast %cst_85 : f32 to vector<1x128xf32>
    %250 = arith.mulf %249, %248 : vector<1x128xf32>
    %c0_86 = arith.constant 0 : index
    %c0_87 = arith.constant 0 : index
    %251 = vector.load %arg1[%c0_86, %c0_87] : memref<39x128xbf16, #tpu.memory_space<vmem>>, vector<39x128xbf16>
    %252 = arith.extf %251 : vector<39x128xbf16> to vector<39x128xf32>
    %cst_88 = arith.constant dense<0.000000e+00> : vector<128xf32>
    %253 = vector.multi_reduction <add>, %252, %cst_88 [0] : vector<39x128xf32> to vector<128xf32>
    %254 = vector.shape_cast %253 : vector<128xf32> to vector<1x128xf32>
    %255 = vector.extract_strided_slice %4 {offsets = [0, 0], sizes = [1, 128], strides = [1, 1]} : vector<40x128xf32> to vector<1x128xf32>
    %256 = arith.addf %254, %255 : vector<1x128xf32>
    %257 = tpu.concatenate %256, %250 in 0 : vector<1x128xf32>, vector<1x128xf32> -> vector<2x128xf32>
    %c0_89 = arith.constant 0 : index
    %c0_90 = arith.constant 0 : index
    %258 = vector.load %arg5[%c0_89, %c0_90] : memref<2x128xf32, #tpu.memory_space<vmem>>, vector<2x128xf32>
    tpu.vector_store %arg5[%c0_89, %c0_90], %257 {strides = array<i32>} : memref<2x128xf32, #tpu.memory_space<vmem>>, vector<2x128xf32>,
    return
  }
  func.func @transform_0(%arg0: i32) -> (i32, i32) {
    %c0_i32 = arith.constant 0 : i32
    %c0_i32_0 = arith.constant 0 : i32
    return %c0_i32, %arg0 : i32, i32
  }
  func.func @transform_1(%arg0: i32) -> (i32, i32, i32) {
    %c0_i32 = arith.constant 0 : i32
    %c0_i32_0 = arith.constant 0 : i32
    %c0_i32_1 = arith.constant 0 : i32
    return %c0_i32, %c0_i32_0, %arg0 : i32, i32, i32
  }
  func.func @transform_2(%arg0: i32) -> (i32, i32) {
    %c0_i32 = arith.constant 0 : i32
    %c0_i32_0 = arith.constant 0 : i32
    return %c0_i32, %arg0 : i32, i32
  }
  func.func @transform_3(%arg0: i32) -> (i32, i32) {
    %c0_i32 = arith.constant 0 : i32
    %c0_i32_0 = arith.constant 0 : i32
    %c0_i32_1 = arith.constant 0 : i32
    return %c0_i32, %c0_i32_0 : i32, i32
  }
  func.func @transform_4(%arg0: i32) -> (i32, i32) {
    %c0_i32 = arith.constant 0 : i32
    %c0_i32_0 = arith.constant 0 : i32
    return %c0_i32, %arg0 : i32, i32
  }
}

</mosaic_0001>

<llo_original>
// kernel: fm_forward.1
$region0: #{fm_forward.1}
  #allocation0 [shape = 'u32[]', space=smem, size = 0x4, offset = 0x4, fixed_abs, tag = 'smem constant byte address 0x4 - core index']
  #allocation1 [shape = 'u32[144,128]{1,0:T(1,128)}', space=vmem, size = 0x12000, scoped, tag = 'internal scratch']
  %s0 = inlined_call_operand.vmem [shape: bf16[39,256], index: 0, kind: input, shape index: {}]
  %s1 = inlined_call_operand.vmem [shape: bf16[39,16,256], index: 1, kind: input, shape index: {}]
  %s2 = inlined_call_operand.vmem [shape: f32[13,256], index: 2, kind: input, shape index: {}]
  %s3 = inlined_call_operand.vmem [shape: f32[40,26], index: 3, kind: input, shape index: {}]
  %s4 = inlined_call_operand.vmem [shape: f32[2,256], index: 4, kind: output, shape index: {}]
  %s5 = sld [smem:[#allocation0]]
  $region169: #{fm_forward.1} parent=0
    _
  %s7 = ssub.s32 1, %s5
  %s8 = scalar_select 0, %s7, %s5
  $region1: #{fm_forward.1} parent=0
    #allocation2 [shape = 'u8[20480]{0}', space=vmem, size = 0x5000, scoped, tag = 'input window, operand 0']
    #allocation3 [shape = 'u8[319488]{0}', space=vmem, size = 0x4e000, scoped, tag = 'input window, operand 1']
    #allocation4 [shape = 'u8[16384]{0}', space=vmem, size = 0x4000, scoped, tag = 'input window, operand 2']
    loop: start=0, step=1, limit=4
    $region2: #{fm_forward.1} parent=1 // loop_pre_header
      _
    $region3: #{fm_forward.1} parent=1 // loop_header
      %s10 = sphi 0, %s14
      %p11 = scmp.ge.s32.totalorder %s10, 4
      %s20 = sphi 0, %s22
      %s23 = sphi 0, %s20
      %s24 = sphi 0, %s23
      %s40 = sphi 0, %s24
      %s46 = sphi 0, %s48
      %s49 = sphi 0, %s46
      %s50 = sphi 0, %s49
      %s66 = sphi 0, %s50
      %s72 = sphi 0, %s74
      %s75 = sphi 0, %s72
      %s76 = sphi 0, %s75
      %s92 = sphi 0, %s76
      %s96 = sphi 0, %s96
      %s98 = sphi 0, %s96
      %s99 = sphi 0, %s98
      %s113 = sphi 0, %s99
      %s119 = sphi 0, %s121
      %s122 = sphi 0, %s119
      %s123 = sphi 0, %s122
      %s139 = sphi 0, %s123
    $region4: #{fm_forward.1} parent=1 // loop_header_branch
      %13 = sbr.rel (%p11) target = $region8
    $region5: #{fm_forward.1} parent=1 // loop_body
      %s15 = ssub.s32 %s10, 1
      %s16 = ssub.s32 %s10, 2
      %s17 = sadd.s32 %s10, 1
      %s18 = ssub.s32 %s10, %s17
      %p19 = scmp.eq.s32.totalorder %s18, 0
      %s21 = sadd.s32 %s20, 1
      %s22 = scalar_select %p19, %s20, %s21
      %p25 = pneg %p19
      %p26 = scmp.eq.s32.totalorder %s10, 1
      %p27 = por %p25, %p26
      %p28 = scmp.ne.s32.totalorder %s20, %s23
      %p29 = scmp.eq.s32.totalorder %s10, 0
      %p30 = por %p28, %p29
      %p31 = scmp.ne.s32.totalorder %s20, %s23
      %p32 = scmp.eq.s32.totalorder %s15, 1
      %p33 = por %p31, %p32
      %p34 = scmp.ne.s32.totalorder %s23, %s24
      %p35 = scmp.eq.s32.totalorder %s15, 0
      %p36 = por %p34, %p35
      %p37 = scmp.ne.s32.totalorder %s23, %s24
      %p38 = scmp.eq.s32.totalorder %s16, 1
      %p39 = por %p37, %p38
      %p41 = scmp.ne.s32.totalorder %s24, %s40
      %p42 = scmp.eq.s32.totalorder %s16, 0
      %p43 = por %p41, %p42
      %s44 = ssub.s32 %s10, %s17
      %p45 = scmp.eq.s32.totalorder %s44, 0
      %s47 = sadd.s32 %s46, 1
      %s48 = scalar_select %p45, %s46, %s47
      %p51 = pneg %p45
      %p52 = scmp.eq.s32.totalorder %s10, 1
      %p53 = por %p51, %p52
      %p54 = scmp.ne.s32.totalorder %s46, %s49
      %p55 = scmp.eq.s32.totalorder %s10, 0
      %p56 = por %p54, %p55
      %p57 = scmp.ne.s32.totalorder %s46, %s49
      %p58 = scmp.eq.s32.totalorder %s15, 1
      %p59 = por %p57, %p58
      %p60 = scmp.ne.s32.totalorder %s49, %s50
      %p61 = scmp.eq.s32.totalorder %s15, 0
      %p62 = por %p60, %p61
      %p63 = scmp.ne.s32.totalorder %s49, %s50
      %p64 = scmp.eq.s32.totalorder %s16, 1
      %p65 = por %p63, %p64
      %p67 = scmp.ne.s32.totalorder %s50, %s66
      %p68 = scmp.eq.s32.totalorder %s16, 0
      %p69 = por %p67, %p68
      %s70 = ssub.s32 %s10, %s17
      %p71 = scmp.eq.s32.totalorder %s70, 0
      %s73 = sadd.s32 %s72, 1
      %s74 = scalar_select %p71, %s72, %s73
      %p77 = pneg %p71
      %p78 = scmp.eq.s32.totalorder %s10, 1
      %p79 = por %p77, %p78
      %p80 = scmp.ne.s32.totalorder %s72, %s75
      %p81 = scmp.eq.s32.totalorder %s10, 0
      %p82 = por %p80, %p81
      %p83 = scmp.ne.s32.totalorder %s72, %s75
      %p84 = scmp.eq.s32.totalorder %s15, 1
      %p85 = por %p83, %p84
      %p86 = scmp.ne.s32.totalorder %s75, %s76
      %p87 = scmp.eq.s32.totalorder %s15, 0
      %p88 = por %p86, %p87
      %p89 = scmp.ne.s32.totalorder %s75, %s76
      %p90 = scmp.eq.s32.totalorder %s16, 1
      %p91 = por %p89, %p90
      %p93 = scmp.ne.s32.totalorder %s76, %s92
      %p94 = scmp.eq.s32.totalorder %s16, 0
      %p95 = por %p93, %p94
      %s97 = sadd.s32 %s96, 1
      %p100 = scmp.eq.s32.totalorder %s10, 1
      %p101 = scmp.ne.s32.totalorder %s96, %s98
      %p102 = scmp.eq.s32.totalorder %s10, 0
      %p103 = por %p101, %p102
      %p104 = scmp.ne.s32.totalorder %s96, %s98
      %p105 = scmp.eq.s32.totalorder %s15, 1
      %p106 = por %p104, %p105
      %p107 = scmp.ne.s32.totalorder %s98, %s99
      %p108 = scmp.eq.s32.totalorder %s15, 0
      %p109 = por %p107, %p108
      %p110 = scmp.ne.s32.totalorder %s98, %s99
      %p111 = scmp.eq.s32.totalorder %s16, 1
      %p112 = por %p110, %p111
      %p114 = scmp.ne.s32.totalorder %s99, %s113
      %p115 = scmp.eq.s32.totalorder %s16, 0
      %p116 = por %p114, %p115
      %s117 = ssub.s32 %s10, %s17
      %p118 = scmp.eq.s32.totalorder %s117, 0
      %s120 = sadd.s32 %s119, 1
      %s121 = scalar_select %p118, %s119, %s120
      %p124 = pneg %p118
      %p125 = scmp.eq.s32.totalorder %s10, 1
      %p126 = por %p124, %p125
      %p127 = scmp.ne.s32.totalorder %s119, %s122
      %p128 = scmp.eq.s32.totalorder %s10, 0
      %p129 = por %p127, %p128
      %p130 = scmp.ne.s32.totalorder %s119, %s122
      %p131 = scmp.eq.s32.totalorder %s15, 1
      %p132 = por %p130, %p131
      %p133 = scmp.ne.s32.totalorder %s122, %s123
      %p134 = scmp.eq.s32.totalorder %s15, 0
      %p135 = por %p133, %p134
      %p136 = scmp.ne.s32.totalorder %s122, %s123
      %p137 = scmp.eq.s32.totalorder %s16, 1
      %p138 = por %p136, %p137
      %p140 = scmp.ne.s32.totalorder %s123, %s139
      %p141 = scmp.eq.s32.totalorder %s16, 0
      %p142 = por %p140, %p141
      %p143 = scmp.le.s32.totalorder 1, %s10
      %p144 = scmp.lt.s32.totalorder %s10, 3
      %p145 = pnand %p143, %p144
      %p146 = pneg %p145
      // Predicated region
      $region9: #{fm_forward.1} parent=5 // pred_check
        _
      $region10: #{fm_forward.1} parent=5 // pred_check_branch
        %148 = sbr.rel (%p145) target = $region12
      $region11: #{fm_forward.1} parent=5 // pred_region
        %s149 = ssub.s32 %s10, 1
        // Predicated region
        $region13: #{fm_forward.1} parent=11 // pred_check
          %p150 = pneg %p109
        $region14: #{fm_forward.1} parent=11 // pred_check_branch
          %152 = sbr.rel (%p150) target = $region16
        $region15: #{fm_forward.1} parent=11 // pred_region
          _
        $region16: #{fm_forward.1} parent=11 // pred_fallthru
          _
      $region12: #{fm_forward.1} parent=5 // pred_fallthru
        _
      %p153 = scmp.lt.s32.totalorder %s10, 2
      // Predicated region
      $region17: #{fm_forward.1} parent=5 // pred_check
        %p154 = pneg %p153
      $region18: #{fm_forward.1} parent=5 // pred_check_branch
        %156 = sbr.rel (%p154) target = $region20
      $region19: #{fm_forward.1} parent=5 // pred_region
        // Predicated region
        $region21: #{fm_forward.1} parent=19 // pred_check
          %p157 = pneg %p30
        $region22: #{fm_forward.1} parent=19 // pred_check_branch
          %159 = sbr.rel (%p157) target = $region24
        $region23: #{fm_forward.1} parent=19 // pred_region
          %s160 = sand.u32 %s20, 1
          %s161 = sand.u32 %s20, 1
          %s162 = smul.addr %s161, 20
          %s163 = scalar_lea.vmem [#allocation2], %s162
          %s164 = smul.addr %s10, 4
          %s165 = scalar_lea.vmem %s0, %s164
          // Predicated region
          $region25: #{fm_forward.1} parent=23 // pred_check
            _
          $region26: #{fm_forward.1} parent=23 // pred_check_branch
            %167 = sbr.rel (0) target = $region28
          $region27: #{fm_forward.1} parent=23 // pred_region
            // Predicated region
            $region29: #{fm_forward.1} parent=27 // pred_check
              _
            $region30: #{fm_forward.1} parent=27 // pred_check_branch
              %169 = sbr.rel target = $region32
            $region31: #{fm_forward.1} parent=27 // pred_region
              // Predicated region
              $region44: #{fm_forward.1} parent=31 // pred_check
                _
              $region45: #{fm_forward.1} parent=31 // pred_check_branch
                %193 = sbr.rel (0) target = $region47
              $region46: #{fm_forward.1} parent=31 // pred_region
                loop: start=0, step=1, limit=1
                $region48: #{fm_forward.1} parent=46 // loop_pre_header
                  _
                $region49: #{fm_forward.1} parent=46 // loop_header
                  %s195 = sphi 0, %s199
                  %p196 = scmp.ge.s32.totalorder %s195, 1
                  %s200 = sphi %s165, %s165
                  %s201 = sphi %s163, %s163
                $region50: #{fm_forward.1} parent=46 // loop_header_branch
                  %198 = sbr.rel (%p196) target = $region54
                $region51: #{fm_forward.1} parent=46 // loop_body
                  _
                $region52: #{fm_forward.1} parent=46 // loop_footer
                  %s199 = sadd.s32 1, %s195
                $region53: #{fm_forward.1} parent=46 // loop_footer_branch
                  %194 = sbr.rel target = $region49
                $region54: #{fm_forward.1} parent=46 // loop_exit
                  _
                %s203 = ssub.s32 16, 1
                loop: start=0, step=1, limit=1
                $region55: #{fm_forward.1} parent=46 // loop_pre_header
                  _
                $region56: #{fm_forward.1} parent=46 // loop_header
                  %s205 = sphi 0, %s209
                  %p206 = scmp.ge.s32.totalorder %s205, 1
                  %s210 = sphi %s165, %s165
                  %s211 = sphi %s163, %s163
                $region57: #{fm_forward.1} parent=46 // loop_header_branch
                  %208 = sbr.rel (%p206) target = $region61
                $region58: #{fm_forward.1} parent=46 // loop_body
                  %v212 = vld [vmem:[%s210] sm:%s203]
                  %213 = vst [vmem:[%s211] sm:%s203] %v212
                  %v214 = vld [vmem:[%s210 + $0x8] sm:%s203]
                  %215 = vst [vmem:[%s211 + $0x4] sm:%s203] %v214
                  %v216 = vld [vmem:[%s210 + $0x10] sm:%s203]
                  %217 = vst [vmem:[%s211 + $0x8] sm:%s203] %v216
                  %v218 = vld [vmem:[%s210 + $0x18] sm:%s203]
                  %219 = vst [vmem:[%s211 + $0xc] sm:%s203] %v218
                  %v220 = vld [vmem:[%s210 + $0x20] sm:%s203]
                  %221 = vst [vmem:[%s211 + $0x10] sm:%s203] %v220
                $region59: #{fm_forward.1} parent=46 // loop_footer
                  %s209 = sadd.s32 1, %s205
                $region60: #{fm_forward.1} parent=46 // loop_footer_branch
                  %204 = sbr.rel target = $region56
                $region61: #{fm_forward.1} parent=46 // loop_exit
                  _
              $region47: #{fm_forward.1} parent=31 // pred_fallthru
                _
            $region32: #{fm_forward.1} parent=27 // pred_fallthru
              _
            // Predicated region
            $region33: #{fm_forward.1} parent=27 // pred_check
              _
            $region34: #{fm_forward.1} parent=27 // pred_check_branch
              %171 = sbr.rel (0) target = $region36
            $region35: #{fm_forward.1} parent=27 // pred_region
              %s173 = ssub.s32 16, 1
              loop: start=0, step=1, limit=1
              $region37: #{fm_forward.1} parent=35 // loop_pre_header
                _
              $region38: #{fm_forward.1} parent=35 // loop_header
                %s175 = sphi 0, %s179
                %p176 = scmp.ge.s32.totalorder %s175, 1
                %s180 = sphi %s165, %s165
                %s181 = sphi %s163, %s163
              $region39: #{fm_forward.1} parent=35 // loop_header_branch
                %178 = sbr.rel (%p176) target = $region43
              $region40: #{fm_forward.1} parent=35 // loop_body
                %v182 = vld [vmem:[%s180] sm:%s173]
                %183 = vst [vmem:[%s181] sm:%s173] %v182
                %v184 = vld [vmem:[%s180 + $0x8] sm:%s173]
                %185 = vst [vmem:[%s181 + $0x4] sm:%s173] %v184
                %v186 = vld [vmem:[%s180 + $0x10] sm:%s173]
                %187 = vst [vmem:[%s181 + $0x8] sm:%s173] %v186
                %v188 = vld [vmem:[%s180 + $0x18] sm:%s173]
                %189 = vst [vmem:[%s181 + $0xc] sm:%s173] %v188
                %v190 = vld [vmem:[%s180 + $0x20] sm:%s173]
                %191 = vst [vmem:[%s181 + $0x10] sm:%s173] %v190
              $region41: #{fm_forward.1} parent=35 // loop_footer
                %s179 = sadd.s32 1, %s175
              $region42: #{fm_forward.1} parent=35 // loop_footer_branch
                %174 = sbr.rel target = $region38
              $region43: #{fm_forward.1} parent=35 // loop_exit
                _
            $region36: #{fm_forward.1} parent=27 // pred_fallthru
              _
          $region28: #{fm_forward.1} parent=23 // pred_fallthru
            _
          %222 = vnop
        $region24: #{fm_forward.1} parent=19 // pred_fallthru
          _
        // Predicated region
        $region62: #{fm_forward.1} parent=19 // pred_check
          %p223 = pneg %p56
        $region63: #{fm_forward.1} parent=19 // pred_check_branch
          %225 = sbr.rel (%p223) target = $region65
        $region64: #{fm_forward.1} parent=19 // pred_region
          %s226 = sand.u32 %s46, 1
          %s227 = sand.u32 %s46, 1
          %s228 = smul.addr %s227, 312
          %s229 = scalar_lea.vmem [#allocation3], %s228
          %s230 = smul.addr %s10, 4
          %s231 = scalar_lea.vmem %s1, %s230
          // Predicated region
          $region66: #{fm_forward.1} parent=64 // pred_check
            _
          $region67: #{fm_forward.1} parent=64 // pred_check_branch
            %233 = sbr.rel (0) target = $region69
          $region68: #{fm_forward.1} parent=64 // pred_region
            // Predicated region
            $region70: #{fm_forward.1} parent=68 // pred_check
              _
            $region71: #{fm_forward.1} parent=68 // pred_check_branch
              %235 = sbr.rel target = $region73
            $region72: #{fm_forward.1} parent=68 // pred_region
              // Predicated region
              $region85: #{fm_forward.1} parent=72 // pred_check
                _
              $region86: #{fm_forward.1} parent=72 // pred_check_branch
                %405 = sbr.rel (0) target = $region88
              $region87: #{fm_forward.1} parent=72 // pred_region
                loop: start=0, step=1, limit=1
                $region89: #{fm_forward.1} parent=87 // loop_pre_header
                  _
                $region90: #{fm_forward.1} parent=87 // loop_header
                  %s407 = sphi 0, %s411
                  %p408 = scmp.ge.s32.totalorder %s407, 1
                  %s412 = sphi %s231, %s231
                  %s413 = sphi %s229, %s229
                $region91: #{fm_forward.1} parent=87 // loop_header_branch
                  %410 = sbr.rel (%p408) target = $region95
                $region92: #{fm_forward.1} parent=87 // loop_body
                  _
                $region93: #{fm_forward.1} parent=87 // loop_footer
                  %s411 = sadd.s32 1, %s407
                $region94: #{fm_forward.1} parent=87 // loop_footer_branch
                  %406 = sbr.rel target = $region90
                $region95: #{fm_forward.1} parent=87 // loop_exit
                  _
                %s415 = ssub.s32 16, 1
                loop: start=0, step=1, limit=1
                $region96: #{fm_forward.1} parent=87 // loop_pre_header
                  _
                $region97: #{fm_forward.1} parent=87 // loop_header
                  %s417 = sphi 0, %s421
                  %p418 = scmp.ge.s32.totalorder %s417, 1
                  %s422 = sphi %s231, %s231
                  %s423 = sphi %s229, %s229
                $region98: #{fm_forward.1} parent=87 // loop_header_branch
                  %420 = sbr.rel (%p418) target = $region102
                $region99: #{fm_forward.1} parent=87 // loop_body
                  %v424 = vld [vmem:[%s422] sm:%s415]
                  %425 = vst [vmem:[%s423] sm:%s415] %v424
                  %v426 = vld [vmem:[%s422 + $0x8] sm:%s415]
                  %427 = vst [vmem:[%s423 + $0x4] sm:%s415] %v426
                  %v428 = vld [vmem:[%s422 + $0x10] sm:%s415]
                  %429 = vst [vmem:[%s423 + $0x8] sm:%s415] %v428
                  %v430 = vld [vmem:[%s422 + $0x18] sm:%s415]
                  %431 = vst [vmem:[%s423 + $0xc] sm:%s415] %v430
                  %v432 = vld [vmem:[%s422 + $0x20] sm:%s415]
                  %433 = vst [vmem:[%s423 + $0x10] sm:%s415] %v432
                  %v434 = vld [vmem:[%s422 + $0x28] sm:%s415]
                  %435 = vst [vmem:[%s423 + $0x14] sm:%s415] %v434
                  %v436 = vld [vmem:[%s422 + $0x30] sm:%s415]
                  %437 = vst [vmem:[%s423 + $0x18] sm:%s415] %v436
                  %v438 = vld [vmem:[%s422 + $0x38] sm:%s415]
                  %439 = vst [vmem:[%s423 + $0x1c] sm:%s415] %v438
                  %v440 = vld [vmem:[%s422 + $0x40] sm:%s415]
                  %441 = vst [vmem:[%s423 + $0x20] sm:%s415] %v440
                  %v442 = vld [vmem:[%s422 + $0x48] sm:%s415]
                  %443 = vst [vmem:[%s423 + $0x24] sm:%s415] %v442
                  %v444 = vld [vmem:[%s422 + $0x50] sm:%s415]
                  %445 = vst [vmem:[%s423 + $0x28] sm:%s415] %v444
                  %v446 = vld [vmem:[%s422 + $0x58] sm:%s415]
                  %447 = vst [vmem:[%s423 + $0x2c] sm:%s415] %v446
                  %v448 = vld [vmem:[%s422 + $0x60] sm:%s415]
                  %449 = vst [vmem:[%s423 + $0x30] sm:%s415] %v448
                  %v450 = vld [vmem:[%s422 + $0x68] sm:%s415]
                  %451 = vst [vmem:[%s423 + $0x34] sm:%s415] %v450
                  %v452 = vld [vmem:[%s422 + $0x70] sm:%s415]
                  %453 = vst [vmem:[%s423 + $0x38] sm:%s415] %v452
                  %v454 = vld [vmem:[%s422 + $0x78] sm:%s415]
                  %455 = vst [vmem:[%s423 + $0x3c] sm:%s415] %v454
                  %v456 = vld [vmem:[%s422 + $0x80] sm:%s415]
                  %457 = vst [vmem:[%s423 + $0x40] sm:%s415] %v456
                  %v458 = vld [vmem:[%s422 + $0x88] sm:%s415]
                  %459 = vst [vmem:[%s423 + $0x44] sm:%s415] %v458
                  %v460 = vld [vmem:[%s422 + $0x90] sm:%s415]
                  %461 = vst [vmem:[%s423 + $0x48] sm:%s415] %v460
                  %v462 = vld [vmem:[%s422 + $0x98] sm:%s415]
                  %463 = vst [vmem:[%s423 + $0x4c] sm:%s415] %v462
                  %v464 = vld [vmem:[%s422 + $0xa0] sm:%s415]
                  %465 = vst [vmem:[%s423 + $0x50] sm:%s415] %v464
                  %v466 = vld [vmem:[%s422 + $0xa8] sm:%s415]
                  %467 = vst [vmem:[%s423 + $0x54] sm:%s415] %v466
                  %v468 = vld [vmem:[%s422 + $0xb0] sm:%s415]
                  %469 = vst [vmem:[%s423 + $0x58] sm:%s415] %v468
                  %v470 = vld [vmem:[%s422 + $0xb8] sm:%s415]
                  %471 = vst [vmem:[%s423 + $0x5c] sm:%s415] %v470
                  %v472 = vld [vmem:[%s422 + $0xc0] sm:%s415]
                  %473 = vst [vmem:[%s423 + $0x60] sm:%s415] %v472
                  %v474 = vld [vmem:[%s422 + $0xc8] sm:%s415]
                  %475 = vst [vmem:[%s423 + $0x64] sm:%s415] %v474
                  %v476 = vld [vmem:[%s422 + $0xd0] sm:%s415]
                  %477 = vst [vmem:[%s423 + $0x68] sm:%s415] %v476
                  %v478 = vld [vmem:[%s422 + $0xd8] sm:%s415]
                  %479 = vst [vmem:[%s423 + $0x6c] sm:%s415] %v478
                  %v480 = vld [vmem:[%s422 + $0xe0] sm:%s415]
                  %481 = vst [vmem:[%s423 + $0x70] sm:%s415] %v480
                  %v482 = vld [vmem:[%s422 + $0xe8] sm:%s415]
                  %483 = vst [vmem:[%s423 + $0x74] sm:%s415] %v482
                  %v484 = vld [vmem:[%s422 + $0xf0] sm:%s415]
                  %485 = vst [vmem:[%s423 + $0x78] sm:%s415] %v484
                  %v486 = vld [vmem:[%s422 + $0xf8] sm:%s415]
                  %487 = vst [vmem:[%s423 + $0x7c] sm:%s415] %v486
                  %v488 = vld [vmem:[%s422 + $0x100] sm:%s415]
                  %489 = vst [vmem:[%s423 + $0x80] sm:%s415] %v488
                  %v490 = vld [vmem:[%s422 + $0x108] sm:%s415]
                  %491 = vst [vmem:[%s423 + $0x84] sm:%s415] %v490
                  %v492 = vld [vmem:[%s422 + $0x110] sm:%s415]
                  %493 = vst [vmem:[%s423 + $0x88] sm:%s415] %v492
                  %v494 = vld [vmem:[%s422 + $0x118] sm:%s415]
                  %495 = vst [vmem:[%s423 + $0x8c] sm:%s415] %v494
                  %v496 = vld [vmem:[%s422 + $0x120] sm:%s415]
                  %497 = vst [vmem:[%s423 + $0x90] sm:%s415] %v496
                  %v498 = vld [vmem:[%s422 + $0x128] sm:%s415]
                  %499 = vst [vmem:[%s423 + $0x94] sm:%s415] %v498
                  %v500 = vld [vmem:[%s422 + $0x130] sm:%s415]
                  %501 = vst [vmem:[%s423 + $0x98] sm:%s415] %v500
                  %v502 = vld [vmem:[%s422 + $0x138] sm:%s415]
                  %503 = vst [vmem:[%s423 + $0x9c] sm:%s415] %v502
                  %v504 = vld [vmem:[%s422 + $0x140] sm:%s415]
                  %505 = vst [vmem:[%s423 + $0xa0] sm:%s415] %v504
                  %v506 = vld [vmem:[%s422 + $0x148] sm:%s415]
                  %507 = vst [vmem:[%s423 + $0xa4] sm:%s415] %v506
                  %v508 = vld [vmem:[%s422 + $0x150] sm:%s415]
                  %509 = vst [vmem:[%s423 + $0xa8] sm:%s415] %v508
                  %v510 = vld [vmem:[%s422 + $0x158] sm:%s415]
                  %511 = vst [vmem:[%s423 + $0xac] sm:%s415] %v510
                  %v512 = vld [vmem:[%s422 + $0x160] sm:%s415]
                  %513 = vst [vmem:[%s423 + $0xb0] sm:%s415] %v512
                  %v514 = vld [vmem:[%s422 + $0x168] sm:%s415]
                  %515 = vst [vmem:[%s423 + $0xb4] sm:%s415] %v514
                  %v516 = vld [vmem:[%s422 + $0x170] sm:%s415]
                  %517 = vst [vmem:[%s423 + $0xb8] sm:%s415] %v516
                  %v518 = vld [vmem:[%s422 + $0x178] sm:%s415]
                  %519 = vst [vmem:[%s423 + $0xbc] sm:%s415] %v518
                  %v520 = vld [vmem:[%s422 + $0x180] sm:%s415]
                  %521 = vst [vmem:[%s423 + $0xc0] sm:%s415] %v520
                  %v522 = vld [vmem:[%s422 + $0x188] sm:%s415]
                  %523 = vst [vmem:[%s423 + $0xc4] sm:%s415] %v522
                  %v524 = vld [vmem:[%s422 + $0x190] sm:%s415]
                  %525 = vst [vmem:[%s423 + $0xc8] sm:%s415] %v524
                  %v526 = vld [vmem:[%s422 + $0x198] sm:%s415]
                  %527 = vst [vmem:[%s423 + $0xcc] sm:%s415] %v526
                  %v528 = vld [vmem:[%s422 + $0x1a0] sm:%s415]
                  %529 = vst [vmem:[%s423 + $0xd0] sm:%s415] %v528
                  %v530 = vld [vmem:[%s422 + $0x1a8] sm:%s415]
                  %531 = vst [vmem:[%s423 + $0xd4] sm:%s415] %v530
                  %v532 = vld [vmem:[%s422 + $0x1b0] sm:%s415]
                  %533 = vst [vmem:[%s423 + $0xd8] sm:%s415] %v532
                  %v534 = vld [vmem:[%s422 + $0x1b8] sm:%s415]
                  %535 = vst [vmem:[%s423 + $0xdc] sm:%s415] %v534
                  %v536 = vld [vmem:[%s422 + $0x1c0] sm:%s415]
                  %537 = vst [vmem:[%s423 + $0xe0] sm:%s415] %v536
                  %v538 = vld [vmem:[%s422 + $0x1c8] sm:%s415]
                  %539 = vst [vmem:[%s423 + $0xe4] sm:%s415] %v538
                  %v540 = vld [vmem:[%s422 + $0x1d0] sm:%s415]
                  %541 = vst [vmem:[%s423 + $0xe8] sm:%s415] %v540
                  %v542 = vld [vmem:[%s422 + $0x1d8] sm:%s415]
                  %543 = vst [vmem:[%s423 + $0xec] sm:%s415] %v542
                  %v544 = vld [vmem:[%s422 + $0x1e0] sm:%s415]
                  %545 = vst [vmem:[%s423 + $0xf0] sm:%s415] %v544
                  %v546 = vld [vmem:[%s422 + $0x1e8] sm:%s415]
                  %547 = vst [vmem:[%s423 + $0xf4] sm:%s415] %v546
                  %v548 = vld [vmem:[%s422 + $0x1f0] sm:%s415]
                  %549 = vst [vmem:[%s423 + $0xf8] sm:%s415] %v548
                  %v550 = vld [vmem:[%s422 + $0x1f8] sm:%s415]
                  %551 = vst [vmem:[%s423 + $0xfc] sm:%s415] %v550
                  %v552 = vld [vmem:[%s422 + $0x200] sm:%s415]
                  %553 = vst [vmem:[%s423 + $0x100] sm:%s415] %v552
                  %v554 = vld [vmem:[%s422 + $0x208] sm:%s415]
                  %555 = vst [vmem:[%s423 + $0x104] sm:%s415] %v554
                  %v556 = vld [vmem:[%s422 + $0x210] sm:%s415]
                  %557 = vst [vmem:[%s423 + $0x108] sm:%s415] %v556
                  %v558 = vld [vmem:[%s422 + $0x218] sm:%s415]
                  %559 = vst [vmem:[%s423 + $0x10c] sm:%s415] %v558
                  %v560 = vld [vmem:[%s422 + $0x220] sm:%s415]
                  %561 = vst [vmem:[%s423 + $0x110] sm:%s415] %v560
                  %v562 = vld [vmem:[%s422 + $0x228] sm:%s415]
                  %563 = vst [vmem:[%s423 + $0x114] sm:%s415] %v562
                  %v564 = vld [vmem:[%s422 + $0x230] sm:%s415]
                  %565 = vst [vmem:[%s423 + $0x118] sm:%s415] %v564
                  %v566 = vld [vmem:[%s422 + $0x238] sm:%s415]
                  %567 = vst [vmem:[%s423 + $0x11c] sm:%s415] %v566
                  %v568 = vld [vmem:[%s422 + $0x240] sm:%s415]
                  %569 = vst [vmem:[%s423 + $0x120] sm:%s415] %v568
                  %v570 = vld [vmem:[%s422 + $0x248] sm:%s415]
                  %571 = vst [vmem:[%s423 + $0x124] sm:%s415] %v570
                  %v572 = vld [vmem:[%s422 + $0x250] sm:%s415]
                  %573 = vst [vmem:[%s423 + $0x128] sm:%s415] %v572
                  %v574 = vld [vmem:[%s422 + $0x258] sm:%s415]
                  %575 = vst [vmem:[%s423 + $0x12c] sm:%s415] %v574
                  %v576 = vld [vmem:[%s422 + $0x260] sm:%s415]
                  %577 = vst [vmem:[%s423 + $0x130] sm:%s415] %v576
                  %v578 = vld [vmem:[%s422 + $0x268] sm:%s415]
                  %579 = vst [vmem:[%s423 + $0x134] sm:%s415] %v578
                $region100: #{fm_forward.1} parent=87 // loop_footer
                  %s421 = sadd.s32 1, %s417
                $region101: #{fm_forward.1} parent=87 // loop_footer_branch
                  %416 = sbr.rel target = $region97
                $region102: #{fm_forward.1} parent=87 // loop_exit
                  _
              $region88: #{fm_forward.1} parent=72 // pred_fallthru
                _
            $region73: #{fm_forward.1} parent=68 // pred_fallthru
              _
            // Predicated region
            $region74: #{fm_forward.1} parent=68 // pred_check
              _
            $region75: #{fm_forward.1} parent=68 // pred_check_branch
              %237 = sbr.rel (0) target = $region77
            $region76: #{fm_forward.1} parent=68 // pred_region
              %s239 = ssub.s32 16, 1
              loop: start=0, step=1, limit=1
              $region78: #{fm_forward.1} parent=76 // loop_pre_header
                _
              $region79: #{fm_forward.1} parent=76 // loop_header
                %s241 = sphi 0, %s245
                %p242 = scmp.ge.s32.totalorder %s241, 1
                %s246 = sphi %s231, %s231
                %s247 = sphi %s229, %s229
              $region80: #{fm_forward.1} parent=76 // loop_header_branch
                %244 = sbr.rel (%p242) target = $region84
              $region81: #{fm_forward.1} parent=76 // loop_body
                %v248 = vld [vmem:[%s246] sm:%s239]
                %249 = vst [vmem:[%s247] sm:%s239] %v248
                %v250 = vld [vmem:[%s246 + $0x8] sm:%s239]
                %251 = vst [vmem:[%s247 + $0x4] sm:%s239] %v250
                %v252 = vld [vmem:[%s246 + $0x10] sm:%s239]
                %253 = vst [vmem:[%s247 + $0x8] sm:%s239] %v252
                %v254 = vld [vmem:[%s246 + $0x18] sm:%s239]
                %255 = vst [vmem:[%s247 + $0xc] sm:%s239] %v254
                %v256 = vld [vmem:[%s246 + $0x20] sm:%s239]
                %257 = vst [vmem:[%s247 + $0x10] sm:%s239] %v256
                %v258 = vld [vmem:[%s246 + $0x28] sm:%s239]
                %259 = vst [vmem:[%s247 + $0x14] sm:%s239] %v258
                %v260 = vld [vmem:[%s246 + $0x30] sm:%s239]
                %261 = vst [vmem:[%s247 + $0x18] sm:%s239] %v260
                %v262 = vld [vmem:[%s246 + $0x38] sm:%s239]
                %263 = vst [vmem:[%s247 + $0x1c] sm:%s239] %v262
                %v264 = vld [vmem:[%s246 + $0x40] sm:%s239]
                %265 = vst [vmem:[%s247 + $0x20] sm:%s239] %v264
                %v266 = vld [vmem:[%s246 + $0x48] sm:%s239]
                %267 = vst [vmem:[%s247 + $0x24] sm:%s239] %v266
                %v268 = vld [vmem:[%s246 + $0x50] sm:%s239]
                %269 = vst [vmem:[%s247 + $0x28] sm:%s239] %v268
                %v270 = vld [vmem:[%s246 + $0x58] sm:%s239]
                %271 = vst [vmem:[%s247 + $0x2c] sm:%s239] %v270
                %v272 = vld [vmem:[%s246 + $0x60] sm:%s239]
                %273 = vst [vmem:[%s247 + $0x30] sm:%s239] %v272
                %v274 = vld [vmem:[%s246 + $0x68] sm:%s239]
                %275 = vst [vmem:[%s247 + $0x34] sm:%s239] %v274
                %v276 = vld [vmem:[%s246 + $0x70] sm:%s239]
                %277 = vst [vmem:[%s247 + $0x38] sm:%s239] %v276
                %v278 = vld [vmem:[%s246 + $0x78] sm:%s239]
                %279 = vst [vmem:[%s247 + $0x3c] sm:%s239] %v278
                %v280 = vld [vmem:[%s246 + $0x80] sm:%s239]
                %281 = vst [vmem:[%s247 + $0x40] sm:%s239] %v280
                %v282 = vld [vmem:[%s246 + $0x88] sm:%s239]
                %283 = vst [vmem:[%s247 + $0x44] sm:%s239] %v282
                %v284 = vld [vmem:[%s246 + $0x90] sm:%s239]
                %285 = vst [vmem:[%s247 + $0x48] sm:%s239] %v284
                %v286 = vld [vmem:[%s246 + $0x98] sm:%s239]
                %287 = vst [vmem:[%s247 + $0x4c] sm:%s239] %v286
                %v288 = vld [vmem:[%s246 + $0xa0] sm:%s239]
                %289 = vst [vmem:[%s247 + $0x50] sm:%s239] %v288
                %v290 = vld [vmem:[%s246 + $0xa8] sm:%s239]
                %291 = vst [vmem:[%s247 + $0x54] sm:%s239] %v290
                %v292 = vld [vmem:[%s246 + $0xb0] sm:%s239]
                %293 = vst [vmem:[%s247 + $0x58] sm:%s239] %v292
                %v294 = vld [vmem:[%s246 + $0xb8] sm:%s239]
                %295 = vst [vmem:[%s247 + $0x5c] sm:%s239] %v294
                %v296 = vld [vmem:[%s246 + $0xc0] sm:%s239]
                %297 = vst [vmem:[%s247 + $0x60] sm:%s239] %v296
                %v298 = vld [vmem:[%s246 + $0xc8] sm:%s239]
                %299 = vst [vmem:[%s247 + $0x64] sm:%s239] %v298
                %v300 = vld [vmem:[%s246 + $0xd0] sm:%s239]
                %301 = vst [vmem:[%s247 + $0x68] sm:%s239] %v300
                %v302 = vld [vmem:[%s246 + $0xd8] sm:%s239]
                %303 = vst [vmem:[%s247 + $0x6c] sm:%s239] %v302
                %v304 = vld [vmem:[%s246 + $0xe0] sm:%s239]
                %305 = vst [vmem:[%s247 + $0x70] sm:%s239] %v304
                %v306 = vld [vmem:[%s246 + $0xe8] sm:%s239]
                %307 = vst [vmem:[%s247 + $0x74] sm:%s239] %v306
                %v308 = vld [vmem:[%s246 + $0xf0] sm:%s239]
                %309 = vst [vmem:[%s247 + $0x78] sm:%s239] %v308
                %v310 = vld [vmem:[%s246 + $0xf8] sm:%s239]
                %311 = vst [vmem:[%s247 + $0x7c] sm:%s239] %v310
                %v312 = vld [vmem:[%s246 + $0x100] sm:%s239]
                %313 = vst [vmem:[%s247 + $0x80] sm:%s239] %v312
                %v314 = vld [vmem:[%s246 + $0x108] sm:%s239]
                %315 = vst [vmem:[%s247 + $0x84] sm:%s239] %v314
                %v316 = vld [vmem:[%s246 + $0x110] sm:%s239]
                %317 = vst [vmem:[%s247 + $0x88] sm:%s239] %v316
                %v318 = vld [vmem:[%s246 + $0x118] sm:%s239]
                %319 = vst [vmem:[%s247 + $0x8c] sm:%s239] %v318
                %v320 = vld [vmem:[%s246 + $0x120] sm:%s239]
                %321 = vst [vmem:[%s247 + $0x90] sm:%s239] %v320
                %v322 = vld [vmem:[%s246 + $0x128] sm:%s239]
                %323 = vst [vmem:[%s247 + $0x94] sm:%s239] %v322
                %v324 = vld [vmem:[%s246 + $0x130] sm:%s239]
                %325 = vst [vmem:[%s247 + $0x98] sm:%s239] %v324
                %v326 = vld [vmem:[%s246 + $0x138] sm:%s239]
                %327 = vst [vmem:[%s247 + $0x9c] sm:%s239] %v326
                %v328 = vld [vmem:[%s246 + $0x140] sm:%s239]
                %329 = vst [vmem:[%s247 + $0xa0] sm:%s239] %v328
                %v330 = vld [vmem:[%s246 + $0x148] sm:%s239]
                %331 = vst [vmem:[%s247 + $0xa4] sm:%s239] %v330
                %v332 = vld [vmem:[%s246 + $0x150] sm:%s239]
                %333 = vst [vmem:[%s247 + $0xa8] sm:%s239] %v332
                %v334 = vld [vmem:[%s246 + $0x158] sm:%s239]
                %335 = vst [vmem:[%s247 + $0xac] sm:%s239] %v334
                %v336 = vld [vmem:[%s246 + $0x160] sm:%s239]
                %337 = vst [vmem:[%s247 + $0xb0] sm:%s239] %v336
                %v338 = vld [vmem:[%s246 + $0x168] sm:%s239]
                %339 = vst [vmem:[%s247 + $0xb4] sm:%s239] %v338
                %v340 = vld [vmem:[%s246 + $0x170] sm:%s239]
                %341 = vst [vmem:[%s247 + $0xb8] sm:%s239] %v340
                %v342 = vld [vmem:[%s246 + $0x178] sm:%s239]
                %343 = vst [vmem:[%s247 + $0xbc] sm:%s239] %v342
                %v344 = vld [vmem:[%s246 + $0x180] sm:%s239]
                %345 = vst [vmem:[%s247 + $0xc0] sm:%s239] %v344
                %v346 = vld [vmem:[%s246 + $0x188] sm:%s239]
                %347 = vst [vmem:[%s247 + $0xc4] sm:%s239] %v346
                %v348 = vld [vmem:[%s246 + $0x190] sm:%s239]
                %349 = vst [vmem:[%s247 + $0xc8] sm:%s239] %v348
                %v350 = vld [vmem:[%s246 + $0x198] sm:%s239]
                %351 = vst [vmem:[%s247 + $0xcc] sm:%s239] %v350
                %v352 = vld [vmem:[%s246 + $0x1a0] sm:%s239]
                %353 = vst [vmem:[%s247 + $0xd0] sm:%s239] %v352
                %v354 = vld [vmem:[%s246 + $0x1a8] sm:%s239]
                %355 = vst [vmem:[%s247 + $0xd4] sm:%s239] %v354
                %v356 = vld [vmem:[%s246 + $0x1b0] sm:%s239]
                %357 = vst [vmem:[%s247 + $0xd8] sm:%s239] %v356
                %v358 = vld [vmem:[%s246 + $0x1b8] sm:%s239]
                %359 = vst [vmem:[%s247 + $0xdc] sm:%s239] %v358
                %v360 = vld [vmem:[%s246 + $0x1c0] sm:%s239]
                %361 = vst [vmem:[%s247 + $0xe0] sm:%s239] %v360
                %v362 = vld [vmem:[%s246 + $0x1c8] sm:%s239]
                %363 = vst [vmem:[%s247 + $0xe4] sm:%s239] %v362
                %v364 = vld [vmem:[%s246 + $0x1d0] sm:%s239]
                %365 = vst [vmem:[%s247 + $0xe8] sm:%s239] %v364
                %v366 = vld [vmem:[%s246 + $0x1d8] sm:%s239]
                %367 = vst [vmem:[%s247 + $0xec] sm:%s239] %v366
                %v368 = vld [vmem:[%s246 + $0x1e0] sm:%s239]
                %369 = vst [vmem:[%s247 + $0xf0] sm:%s239] %v368
                %v370 = vld [vmem:[%s246 + $0x1e8] sm:%s239]
                %371 = vst [vmem:[%s247 + $0xf4] sm:%s239] %v370
                %v372 = vld [vmem:[%s246 + $0x1f0] sm:%s239]
                %373 = vst [vmem:[%s247 + $0xf8] sm:%s239] %v372
                %v374 = vld [vmem:[%s246 + $0x1f8] sm:%s239]
                %375 = vst [vmem:[%s247 + $0xfc] sm:%s239] %v374
                %v376 = vld [vmem:[%s246 + $0x200] sm:%s239]
                %377 = vst [vmem:[%s247 + $0x100] sm:%s239] %v376
                %v378 = vld [vmem:[%s246 + $0x208] sm:%s239]
                %379 = vst [vmem:[%s247 + $0x104] sm:%s239] %v378
                %v380 = vld [vmem:[%s246 + $0x210] sm:%s239]
                %381 = vst [vmem:[%s247 + $0x108] sm:%s239] %v380
                %v382 = vld [vmem:[%s246 + $0x218] sm:%s239]
                %383 = vst [vmem:[%s247 + $0x10c] sm:%s239] %v382
                %v384 = vld [vmem:[%s246 + $0x220] sm:%s239]
                %385 = vst [vmem:[%s247 + $0x110] sm:%s239] %v384
                %v386 = vld [vmem:[%s246 + $0x228] sm:%s239]
                %387 = vst [vmem:[%s247 + $0x114] sm:%s239] %v386
                %v388 = vld [vmem:[%s246 + $0x230] sm:%s239]
                %389 = vst [vmem:[%s247 + $0x118] sm:%s239] %v388
                %v390 = vld [vmem:[%s246 + $0x238] sm:%s239]
                %391 = vst [vmem:[%s247 + $0x11c] sm:%s239] %v390
                %v392 = vld [vmem:[%s246 + $0x240] sm:%s239]
                %393 = vst [vmem:[%s247 + $0x120] sm:%s239] %v392
                %v394 = vld [vmem:[%s246 + $0x248] sm:%s239]
                %395 = vst [vmem:[%s247 + $0x124] sm:%s239] %v394
                %v396 = vld [vmem:[%s246 + $0x250] sm:%s239]
                %397 = vst [vmem:[%s247 + $0x128] sm:%s239] %v396
                %v398 = vld [vmem:[%s246 + $0x258] sm:%s239]
                %399 = vst [vmem:[%s247 + $0x12c] sm:%s239] %v398
                %v400 = vld [vmem:[%s246 + $0x260] sm:%s239]
                %401 = vst [vmem:[%s247 + $0x130] sm:%s239] %v400
                %v402 = vld [vmem:[%s246 + $0x268] sm:%s239]
                %403 = vst [vmem:[%s247 + $0x134] sm:%s239] %v402
              $region82: #{fm_forward.1} parent=76 // loop_footer
                %s245 = sadd.s32 1, %s241
              $region83: #{fm_forward.1} parent=76 // loop_footer_branch
                %240 = sbr.rel target = $region79
              $region84: #{fm_forward.1} parent=76 // loop_exit
                _
            $region77: #{fm_forward.1} parent=68 // pred_fallthru
              _
          $region69: #{fm_forward.1} parent=64 // pred_fallthru
            _
          %580 = vnop
        $region65: #{fm_forward.1} parent=19 // pred_fallthru
          _
        // Predicated region
        $region103: #{fm_forward.1} parent=19 // pred_check
          %p581 = pneg %p82
        $region104: #{fm_forward.1} parent=19 // pred_check_branch
          %583 = sbr.rel (%p581) target = $region106
        $region105: #{fm_forward.1} parent=19 // pred_region
          %s584 = sand.u32 %s72, 1
          %s585 = sand.u32 %s72, 1
          %s586 = smul.addr %s585, 16
          %s587 = scalar_lea.vmem [#allocation4], %s586
          %s588 = smul.addr %s10, 8
          %s589 = scalar_lea.vmem %s2, %s588
          // Predicated region
          $region107: #{fm_forward.1} parent=105 // pred_check
            _
          $region108: #{fm_forward.1} parent=105 // pred_check_branch
            %591 = sbr.rel (0) target = $region110
          $region109: #{fm_forward.1} parent=105 // pred_region
            // Predicated region
            $region111: #{fm_forward.1} parent=109 // pred_check
              _
            $region112: #{fm_forward.1} parent=109 // pred_check_branch
              %593 = sbr.rel (0) target = $region114
            $region113: #{fm_forward.1} parent=109 // pred_region
              // Predicated region
              $region126: #{fm_forward.1} parent=113 // pred_check
                _
              $region127: #{fm_forward.1} parent=113 // pred_check_branch
                %611 = sbr.rel (0) target = $region129
              $region128: #{fm_forward.1} parent=113 // pred_region
                loop: start=0, step=1, limit=1
                $region130: #{fm_forward.1} parent=128 // loop_pre_header
                  _
                $region131: #{fm_forward.1} parent=128 // loop_header
                  %s613 = sphi 0, %s617
                  %p614 = scmp.ge.s32.totalorder %s613, 1
                  %s618 = sphi %s589, %s589
                  %s619 = sphi %s587, %s587
                $region132: #{fm_forward.1} parent=128 // loop_header_branch
                  %616 = sbr.rel (%p614) target = $region136
                $region133: #{fm_forward.1} parent=128 // loop_body
                  %v620 = vld [vmem:[%s618] sm:$0xff]
                  %621 = vst [vmem:[%s619] sm:$0xff] %v620
                  %v622 = vld [vmem:[%s618 + $0x10] sm:$0xff]
                  %623 = vst [vmem:[%s619 + $0x8] sm:$0xff] %v622
                $region134: #{fm_forward.1} parent=128 // loop_footer
                  %s617 = sadd.s32 1, %s613
                $region135: #{fm_forward.1} parent=128 // loop_footer_branch
                  %612 = sbr.rel target = $region131
                $region136: #{fm_forward.1} parent=128 // loop_exit
                  _
              $region129: #{fm_forward.1} parent=113 // pred_fallthru
                _
              // Predicated region
              $region137: #{fm_forward.1} parent=113 // pred_check
                _
              $region138: #{fm_forward.1} parent=113 // pred_check_branch
                %625 = sbr.rel target = $region140
              $region139: #{fm_forward.1} parent=113 // pred_region
                _
              $region140: #{fm_forward.1} parent=113 // pred_fallthru
                _
            $region114: #{fm_forward.1} parent=109 // pred_fallthru
              _
            // Predicated region
            $region115: #{fm_forward.1} parent=109 // pred_check
              _
            $region116: #{fm_forward.1} parent=109 // pred_check_branch
              %595 = sbr.rel target = $region118
            $region117: #{fm_forward.1} parent=109 // pred_region
              %s597 = ssub.s32 256, 1
              loop: start=0, step=1, limit=1
              $region119: #{fm_forward.1} parent=117 // loop_pre_header
                _
              $region120: #{fm_forward.1} parent=117 // loop_header
                %s599 = sphi 0, %s603
                %p600 = scmp.ge.s32.totalorder %s599, 1
                %s604 = sphi %s589, %s589
                %s605 = sphi %s587, %s587
              $region121: #{fm_forward.1} parent=117 // loop_header_branch
                %602 = sbr.rel (%p600) target = $region125
              $region122: #{fm_forward.1} parent=117 // loop_body
                %v606 = vld [vmem:[%s604] sm:%s597]
                %607 = vst [vmem:[%s605] sm:%s597] %v606
                %v608 = vld [vmem:[%s604 + $0x10] sm:%s597]
                %609 = vst [vmem:[%s605 + $0x8] sm:%s597] %v608
              $region123: #{fm_forward.1} parent=117 // loop_footer
                %s603 = sadd.s32 1, %s599
              $region124: #{fm_forward.1} parent=117 // loop_footer_branch
                %598 = sbr.rel target = $region120
              $region125: #{fm_forward.1} parent=117 // loop_exit
                _
            $region118: #{fm_forward.1} parent=109 // pred_fallthru
              _
          $region110: #{fm_forward.1} parent=105 // pred_fallthru
            _
          %626 = vnop
        $region106: #{fm_forward.1} parent=19 // pred_fallthru
          _
      $region20: #{fm_forward.1} parent=5 // pred_fallthru
        _
      %p627 = scmp.le.s32.totalorder 1, %s10
      %p628 = scmp.lt.s32.totalorder %s10, 3
      %p629 = pnand %p627, %p628
      %p630 = pneg %p629
      // Predicated region
      $region141: #{fm_forward.1} parent=5 // pred_check
        _
      $region142: #{fm_forward.1} parent=5 // pred_check_branch
        %632 = sbr.rel (%p629) target = $region144
      $region143: #{fm_forward.1} parent=5 // pred_region
        %s633 = ssub.s32 %s10, 1
        %s634 = sand.u32 %s23, 1
        %s635 = sand.u32 %s23, 1
        %s636 = smul.addr %s635, 20
        %s637 = scalar_lea.vmem [#allocation2], %s636
        // Predicated region
        $region145: #{fm_forward.1} parent=143 // pred_check
          %p638 = pneg %p36
        $region146: #{fm_forward.1} parent=143 // pred_check_branch
          %640 = sbr.rel (%p638) target = $region148
        $region147: #{fm_forward.1} parent=143 // pred_region
          _
        $region148: #{fm_forward.1} parent=143 // pred_fallthru
          _
        %s641 = sand.u32 %s49, 1
        %s642 = sand.u32 %s49, 1
        %s643 = smul.addr %s642, 312
        %s644 = scalar_lea.vmem [#allocation3], %s643
        // Predicated region
        $region149: #{fm_forward.1} parent=143 // pred_check
          %p645 = pneg %p62
        $region150: #{fm_forward.1} parent=143 // pred_check_branch
          %647 = sbr.rel (%p645) target = $region152
        $region151: #{fm_forward.1} parent=143 // pred_region
          _
        $region152: #{fm_forward.1} parent=143 // pred_fallthru
          _
        %s648 = sand.u32 %s75, 1
        %s649 = sand.u32 %s75, 1
        %s650 = smul.addr %s649, 16
        %s651 = scalar_lea.vmem [#allocation4], %s650
        // Predicated region
        $region153: #{fm_forward.1} parent=143 // pred_check
          %p652 = pneg %p88
        $region154: #{fm_forward.1} parent=143 // pred_check_branch
          %654 = sbr.rel (%p652) target = $region156
        $region155: #{fm_forward.1} parent=143 // pred_region
          _
        $region156: #{fm_forward.1} parent=143 // pred_fallthru
          _
        %s655 = sand.u32 %s23, 1
        %s656 = sand.u32 %s23, 1
        %s657 = smul.addr %s656, 20
        %s658 = scalar_lea.vmem [#allocation2], %s657
        %p659 = pneg %p36
        %p660 = pneg %p33
        %s661 = sand.u32 %s49, 1
        %s662 = sand.u32 %s49, 1
        %s663 = smul.addr %s662, 312
        %s664 = scalar_lea.vmem [#allocation3], %s663
        %p665 = pneg %p62
        %p666 = pneg %p59
        %s667 = sand.u32 %s75, 1
        %s668 = sand.u32 %s75, 1
        %s669 = smul.addr %s668, 16
        %s670 = scalar_lea.vmem [#allocation4], %s669
        %p671 = pneg %p88
        %p672 = pneg %p85
        %p673 = pneg %p109
        %p674 = pneg %p106
        %p675 = pneg %p135
        %p676 = pneg %p132
        %p677 = scmp.lt.s32.totalorder %s15, 1
        %s678 = scalar_select %p677, %s15, 1
        %s679 = smul.addr %s678, 2
        %s680 = scalar_lea.vmem %s4, %s679
        %p681 = scmp.lt.s32.totalorder %s15, 1
        %s682 = scalar_select %p681, %s15, 1
        %s683 = smul.addr %s682, 2
        %s684 = scalar_lea.vmem %s4, %s683
        %v685 = vld [vmem:[%s3] sm:$0xff]
        %v686 = vld [vmem:[%s3 + $0x8] sm:$0xff]
        %v687 = vld [vmem:[%s3 + $0x10] sm:$0xff]
        %v688 = vld [vmem:[%s3 + $0x18] sm:$0xff]
        %v689 = vld [vmem:[%s3 + $0x20] sm:$0xff]
        %v690 = vld [vmem:[%s651] sm:$0xff]
        %v691 = vld [vmem:[%s651 + $0x8] sm:$0x1f]
        %v692 = vmul.f32 %v690, %v690
        %v693 = vmul.f32 %v691, %v691
        %vm696 = vcmask 1044480
        %v697 = vrot.slane %v692, 3
        %v698 = vrot.slane %v693, 3
        %v699 = vsel %vm696, %v697, %v698
        %v702 = vsel %vm696, %v691, %v697
        %vm703 = vcmask 211968
        %v705 = vsel %vm703, %v685, 0
        %v708 = vsel %vm703, %v686, 0
        %v711 = vsel %vm703, %v687, 0
        %v714 = vsel %vm703, %v688, 0
        %v717 = vsel %vm703, %v689, 0
        %vm719 = vcmask 1041408
        %v720 = vsel %vm719, %v698, 0
        %722 = vmatprep.subr.mxu0 0.0
        %723 = vmatpush1.msra.mxu0 0.0
        %724 = vmatprep.subr.mxu0 0.0
        %725 = vmatpush1.msra.mxu0 0.0
        %726 = vmatprep.subr.mxu0 0.0
        %727 = vmatpush1.msra.mxu0 0.0
        %728 = vmatprep.subr.mxu0 0.0
        %729 = vmatpush1.msra.mxu0 0.0
        %730 = vmatprep.subr.mxu0 0.0
        %731 = vmatpush1.msra.mxu0 0.0
        %732 = vmatprep.subr.mxu0 0.0
        %733 = vmatpush1.msra.mxu0 0.0
        %734 = vmatprep.subr.mxu0 0.0
        %735 = vmatpush1.msra.mxu0 0.0
        %736 = vmatprep.subr.mxu0 0.0
        %737 = vmatpush1.msra.mxu0 0.0
        %738 = vmatprep.subr.mxu0 0.0
        %739 = vmatpush1.msra.mxu0 0.0
        %740 = vmatprep.subr.mxu0 0.0
        %741 = vmatpush1.msra.mxu0 0.0
        %742 = vmatprep.subr.mxu0 0.0
        %743 = vmatpush1.msra.mxu0 0.0
        %744 = vmatprep.subr.mxu0 0.0
        %745 = vmatpush1.msra.mxu0 0.0
        %746 = vmatprep.subr.mxu0 0.0
        %747 = vmatpush1.msra.mxu0 %v720
        %748 = vmatprep.subr.mxu0 0.0
        %749 = vmatpush1.msra.mxu0 %v699
        %750 = vmatprep.subr.mxu0 0.0
        %751 = vmatpush1.msra.mxu0 %v702
        %752 = vmatprep.subr.mxu0 0.0
        %753 = vmatpush1.msra.mxu0 %v690
        %754 = vmatprep.subr.mxu0 0.0
        %755 = vmatpush2.msra.mxu0 0.0
        %756 = vmatprep.subr.mxu0 0.0
        %757 = vmatpush2.msra.mxu0 0.0
        %758 = vmatprep.subr.mxu0 0.0
        %759 = vmatpush2.msra.mxu0 0.0
        %760 = vmatprep.subr.mxu0 0.0
        %761 = vmatpush2.msra.mxu0 0.0
        %762 = vmatprep.subr.mxu0 0.0
        %763 = vmatpush2.msra.mxu0 0.0
        %764 = vmatprep.subr.mxu0 0.0
        %765 = vmatpush2.msra.mxu0 0.0
        %766 = vmatprep.subr.mxu0 0.0
        %767 = vmatpush2.msra.mxu0 0.0
        %768 = vmatprep.subr.mxu0 0.0
        %769 = vmatpush2.msra.mxu0 0.0
        %770 = vmatprep.subr.mxu0 0.0
        %771 = vmatpush2.msra.mxu0 0.0
        %772 = vmatprep.subr.mxu0 0.0
        %773 = vmatpush2.msra.mxu0 0.0
        %774 = vmatprep.subr.mxu0 0.0
        %775 = vmatpush2.msra.mxu0 0.0
        %776 = vmatprep.subr.mxu0 0.0
        %777 = vmatpush2.msra.mxu0 0.0
        %778 = vmatprep.subr.mxu0 0.0
        %779 = vmatpush2.msra.mxu0 0.0
        %780 = vmatprep.subr.mxu0 0.0
        %781 = vmatpush2.msra.mxu0 0.0
        %782 = vmatprep.subr.mxu0 0.0
        %783 = vmatpush2.msra.mxu0 0.0
        %784 = vmatprep.subr.mxu0 0.0
        %785 = vmatpush2.msra.mxu0 0.0
        %786 = vmatprep.mubr.f32.mxu0 0.0
        %787 = vmatmul.mubr.f32.gmra.mxu0 %v705
        %v788 = vpop.f32.mrf.mxu0
        %v789 = vadd.f32 0.0, %v788
        %v790 = vpop.f32.mrf.mxu0
        %791 = vmatprep.mubr.f32.mxu0 0.0
        %792 = vmatmul.mubr.f32.gmra.mxu0 %v708
        %v793 = vpop.f32.mrf.mxu0
        %v794 = vadd.f32 0.0, %v793
        %v795 = vpop.f32.mrf.mxu0
        %796 = vmatprep.mubr.f32.mxu0 0.0
        %797 = vmatmul.mubr.f32.gmra.mxu0 %v711
        %v798 = vpop.f32.mrf.mxu0
        %v799 = vadd.f32 0.0, %v798
        %v800 = vpop.f32.mrf.mxu0
        %801 = vmatprep.mubr.f32.mxu0 0.0
        %802 = vmatmul.mubr.f32.gmra.mxu0 %v714
        %v803 = vpop.f32.mrf.mxu0
        %v804 = vadd.f32 0.0, %v803
        %v805 = vpop.f32.mrf.mxu0
        %806 = vmatprep.mubr.f32.mxu0 0.0
        %807 = vmatmul.mubr.f32.gmra.mxu0 %v717
        %v808 = vpop.f32.mrf.mxu0
        %v809 = vadd.f32 0.0, %v808
        %v810 = vpop.f32.mrf.mxu0
        %811 = vdwg.mxu0
        %v812 = vld [vmem:[%s644] sm:$0xf]
        %v813 = vld [vmem:[%s644 + $0x4] sm:$0xf]
        %v814 = vunpack.c.l.bf16 %v812
        %v815 = vunpack.c.l.bf16 %v813
        %v816 = vadd.f32 %v814, 0.0
        %v817 = vadd.f32 %v815, 0.0
        %v818 = vmul.f32 %v814, %v814
        %v819 = vmul.f32 %v815, %v815
        %v820 = vadd.f32 %v818, 0.0
        %v821 = vadd.f32 %v819, 0.0
        %s822 = scalar_lea.vmem %s644, 8 [#allocation3]
        %v823 = vld [vmem:[%s822] sm:$0xf]
        %v824 = vld [vmem:[%s822 + $0x4] sm:$0xf]
        %v825 = vunpack.c.l.bf16 %v823
        %v826 = vunpack.c.l.bf16 %v824
        %v827 = vadd.f32 %v816, %v825
        %v828 = vadd.f32 %v817, %v826
        %v829 = vmul.f32 %v825, %v825
        %v830 = vmul.f32 %v826, %v826
        %v831 = vadd.f32 %v820, %v829
        %v832 = vadd.f32 %v821, %v830
        %s833 = scalar_lea.vmem %s644, 16 [#allocation3]
        %v834 = vld [vmem:[%s833] sm:$0xf]
        %v835 = vld [vmem:[%s833 + $0x4] sm:$0xf]
        %v836 = vunpack.c.l.bf16 %v834
        %v837 = vunpack.c.l.bf16 %v835
        %v838 = vadd.f32 %v827, %v836
        %v839 = vadd.f32 %v828, %v837
        %v840 = vmul.f32 %v836, %v836
        %v841 = vmul.f32 %v837, %v837
        %v842 = vadd.f32 %v831, %v840
        %v843 = vadd.f32 %v832, %v841
        %s844 = scalar_lea.vmem %s644, 24 [#allocation3]
        %v845 = vld [vmem:[%s844] sm:$0xf]
        %v846 = vld [vmem:[%s844 + $0x4] sm:$0xf]
        %v847 = vunpack.c.l.bf16 %v845
        %v848 = vunpack.c.l.bf16 %v846
        %v849 = vadd.f32 %v838, %v847
        %v850 = vadd.f32 %v839, %v848
        %v851 = vmul.f32 %v847, %v847
        %v852 = vmul.f32 %v848, %v848
        %v853 = vadd.f32 %v842, %v851
        %v854 = vadd.f32 %v843, %v852
        %s855 = scalar_lea.vmem %s644, 32 [#allocation3]
        %v856 = vld [vmem:[%s855] sm:$0xf]
        %v857 = vld [vmem:[%s855 + $0x4] sm:$0xf]
        %v858 = vunpack.c.l.bf16 %v856
        %v859 = vunpack.c.l.bf16 %v857
        %v860 = vadd.f32 %v849, %v858
        %v861 = vadd.f32 %v850, %v859
        %v862 = vmul.f32 %v858, %v858
        %v863 = vmul.f32 %v859, %v859
        %v864 = vadd.f32 %v853, %v862
        %v865 = vadd.f32 %v854, %v863
        %s866 = scalar_lea.vmem %s644, 40 [#allocation3]
        %v867 = vld [vmem:[%s866] sm:$0xf]
        %v868 = vld [vmem:[%s866 + $0x4] sm:$0xf]
        %v869 = vunpack.c.l.bf16 %v867
        %v870 = vunpack.c.l.bf16 %v868
        %v871 = vadd.f32 %v860, %v869
        %v872 = vadd.f32 %v861, %v870
        %v873 = vmul.f32 %v869, %v869
        %v874 = vmul.f32 %v870, %v870
        %v875 = vadd.f32 %v864, %v873
        %v876 = vadd.f32 %v865, %v874
        %s877 = scalar_lea.vmem %s644, 48 [#allocation3]
        %v878 = vld [vmem:[%s877] sm:$0xf]
        %v879 = vld [vmem:[%s877 + $0x4] sm:$0xf]
        %v880 = vunpack.c.l.bf16 %v878
        %v881 = vunpack.c.l.bf16 %v879
        %v882 = vadd.f32 %v871, %v880
        %v883 = vadd.f32 %v872, %v881
        %v884 = vmul.f32 %v880, %v880
        %v885 = vmul.f32 %v881, %v881
        %v886 = vadd.f32 %v875, %v884
        %v887 = vadd.f32 %v876, %v885
        %s888 = scalar_lea.vmem %s644, 56 [#allocation3]
        %v889 = vld [vmem:[%s888] sm:$0xf]
        %v890 = vld [vmem:[%s888 + $0x4] sm:$0xf]
        %v891 = vunpack.c.l.bf16 %v889
        %v892 = vunpack.c.l.bf16 %v890
        %v893 = vadd.f32 %v882, %v891
        %v894 = vadd.f32 %v883, %v892
        %v895 = vmul.f32 %v891, %v891
        %v896 = vmul.f32 %v892, %v892
        %v897 = vadd.f32 %v886, %v895
        %v898 = vadd.f32 %v887, %v896
        %s899 = scalar_lea.vmem %s644, 64 [#allocation3]
        %v900 = vld [vmem:[%s899] sm:$0xf]
        %v901 = vld [vmem:[%s899 + $0x4] sm:$0xf]
        %v902 = vunpack.c.l.bf16 %v900
        %v903 = vunpack.c.l.bf16 %v901
        %v904 = vadd.f32 %v893, %v902
        %v905 = vadd.f32 %v894, %v903
        %v906 = vmul.f32 %v902, %v902
        %v907 = vmul.f32 %v903, %v903
        %v908 = vadd.f32 %v897, %v906
        %v909 = vadd.f32 %v898, %v907
        %s910 = scalar_lea.vmem %s644, 72 [#allocation3]
        %v911 = vld [vmem:[%s910] sm:$0xf]
        %v912 = vld [vmem:[%s910 + $0x4] sm:$0xf]
        %v913 = vunpack.c.l.bf16 %v911
        %v914 = vunpack.c.l.bf16 %v912
        %v915 = vadd.f32 %v904, %v913
        %v916 = vadd.f32 %v905, %v914
        %v917 = vmul.f32 %v913, %v913
        %v918 = vmul.f32 %v914, %v914
        %v919 = vadd.f32 %v908, %v917
        %v920 = vadd.f32 %v909, %v918
        %s921 = scalar_lea.vmem %s644, 80 [#allocation3]
        %v922 = vld [vmem:[%s921] sm:$0xf]
        %v923 = vld [vmem:[%s921 + $0x4] sm:$0xf]
        %v924 = vunpack.c.l.bf16 %v922
        %v925 = vunpack.c.l.bf16 %v923
        %v926 = vadd.f32 %v915, %v924
        %v927 = vadd.f32 %v916, %v925
        %v928 = vmul.f32 %v924, %v924
        %v929 = vmul.f32 %v925, %v925
        %v930 = vadd.f32 %v919, %v928
        %v931 = vadd.f32 %v920, %v929
        %s932 = scalar_lea.vmem %s644, 88 [#allocation3]
        %v933 = vld [vmem:[%s932] sm:$0xf]
        %v934 = vld [vmem:[%s932 + $0x4] sm:$0xf]
        %v935 = vunpack.c.l.bf16 %v933
        %v936 = vunpack.c.l.bf16 %v934
        %v937 = vadd.f32 %v926, %v935
        %v938 = vadd.f32 %v927, %v936
        %v939 = vmul.f32 %v935, %v935
        %v940 = vmul.f32 %v936, %v936
        %v941 = vadd.f32 %v930, %v939
        %v942 = vadd.f32 %v931, %v940
        %s943 = scalar_lea.vmem %s644, 96 [#allocation3]
        %v944 = vld [vmem:[%s943] sm:$0xf]
        %v945 = vld [vmem:[%s943 + $0x4] sm:$0xf]
        %v946 = vunpack.c.l.bf16 %v944
        %v947 = vunpack.c.l.bf16 %v945
        %v948 = vadd.f32 %v937, %v946
        %v949 = vadd.f32 %v938, %v947
        %v950 = vmul.f32 %v946, %v946
        %v951 = vmul.f32 %v947, %v947
        %v952 = vadd.f32 %v941, %v950
        %v953 = vadd.f32 %v942, %v951
        %s954 = scalar_lea.vmem %s644, 104 [#allocation3]
        %v955 = vld [vmem:[%s954] sm:$0xf]
        %v956 = vld [vmem:[%s954 + $0x4] sm:$0xf]
        %v957 = vunpack.c.l.bf16 %v955
        %v958 = vunpack.c.l.bf16 %v956
        %v959 = vadd.f32 %v948, %v957
        %v960 = vadd.f32 %v949, %v958
        %v961 = vmul.f32 %v957, %v957
        %v962 = vmul.f32 %v958, %v958
        %v963 = vadd.f32 %v952, %v961
        %v964 = vadd.f32 %v953, %v962
        %s965 = scalar_lea.vmem %s644, 112 [#allocation3]
        %v966 = vld [vmem:[%s965] sm:$0xf]
        %v967 = vld [vmem:[%s965 + $0x4] sm:$0xf]
        %v968 = vunpack.c.l.bf16 %v966
        %v969 = vunpack.c.l.bf16 %v967
        %v970 = vadd.f32 %v959, %v968
        %v971 = vadd.f32 %v960, %v969
        %v972 = vmul.f32 %v968, %v968
        %v973 = vmul.f32 %v969, %v969
        %v974 = vadd.f32 %v963, %v972
        %v975 = vadd.f32 %v964, %v973
        %s976 = scalar_lea.vmem %s644, 120 [#allocation3]
        %v977 = vld [vmem:[%s976] sm:$0xf]
        %v978 = vld [vmem:[%s976 + $0x4] sm:$0xf]
        %v979 = vunpack.c.l.bf16 %v977
        %v980 = vunpack.c.l.bf16 %v978
        %v981 = vadd.f32 %v970, %v979
        %v982 = vadd.f32 %v971, %v980
        %v983 = vmul.f32 %v979, %v979
        %v984 = vmul.f32 %v980, %v980
        %v985 = vadd.f32 %v974, %v983
        %v986 = vadd.f32 %v975, %v984
        %s987 = scalar_lea.vmem %s644, 128 [#allocation3]
        %v988 = vld [vmem:[%s987] sm:$0xf]
        %v989 = vld [vmem:[%s987 + $0x4] sm:$0xf]
        %v990 = vunpack.c.l.bf16 %v988
        %v991 = vunpack.c.l.bf16 %v989
        %v992 = vadd.f32 %v981, %v990
        %v993 = vadd.f32 %v982, %v991
        %v994 = vmul.f32 %v990, %v990
        %v995 = vmul.f32 %v991, %v991
        %v996 = vadd.f32 %v985, %v994
        %v997 = vadd.f32 %v986, %v995
        %s998 = scalar_lea.vmem %s644, 136 [#allocation3]
        %v999 = vld [vmem:[%s998] sm:$0xf]
        %v1000 = vld [vmem:[%s998 + $0x4] sm:$0xf]
        %v1001 = vunpack.c.l.bf16 %v999
        %v1002 = vunpack.c.l.bf16 %v1000
        %v1003 = vadd.f32 %v992, %v1001
        %v1004 = vadd.f32 %v993, %v1002
        %v1005 = vmul.f32 %v1001, %v1001
        %v1006 = vmul.f32 %v1002, %v1002
        %v1007 = vadd.f32 %v996, %v1005
        %v1008 = vadd.f32 %v997, %v1006
        %s1009 = scalar_lea.vmem %s644, 144 [#allocation3]
        %v1010 = vld [vmem:[%s1009] sm:$0xf]
        %v1011 = vld [vmem:[%s1009 + $0x4] sm:$0xf]
        %v1012 = vunpack.c.l.bf16 %v1010
        %v1013 = vunpack.c.l.bf16 %v1011
        %v1014 = vadd.f32 %v1003, %v1012
        %v1015 = vadd.f32 %v1004, %v1013
        %v1016 = vmul.f32 %v1012, %v1012
        %v1017 = vmul.f32 %v1013, %v1013
        %v1018 = vadd.f32 %v1007, %v1016
        %v1019 = vadd.f32 %v1008, %v1017
        %s1020 = scalar_lea.vmem %s644, 152 [#allocation3]
        %v1021 = vld [vmem:[%s1020] sm:$0xf]
        %v1022 = vld [vmem:[%s1020 + $0x4] sm:$0xf]
        %v1023 = vunpack.c.l.bf16 %v1021
        %v1024 = vunpack.c.l.bf16 %v1022
        %v1025 = vadd.f32 %v1014, %v1023
        %v1026 = vadd.f32 %v1015, %v1024
        %v1027 = vmul.f32 %v1023, %v1023
        %v1028 = vmul.f32 %v1024, %v1024
        %v1029 = vadd.f32 %v1018, %v1027
        %v1030 = vadd.f32 %v1019, %v1028
        %s1031 = scalar_lea.vmem %s644, 160 [#allocation3]
        %v1032 = vld [vmem:[%s1031] sm:$0xf]
        %v1033 = vld [vmem:[%s1031 + $0x4] sm:$0xf]
        %v1034 = vunpack.c.l.bf16 %v1032
        %v1035 = vunpack.c.l.bf16 %v1033
        %v1036 = vadd.f32 %v1025, %v1034
        %v1037 = vadd.f32 %v1026, %v1035
        %v1038 = vmul.f32 %v1034, %v1034
        %v1039 = vmul.f32 %v1035, %v1035
        %v1040 = vadd.f32 %v1029, %v1038
        %v1041 = vadd.f32 %v1030, %v1039
        %s1042 = scalar_lea.vmem %s644, 168 [#allocation3]
        %v1043 = vld [vmem:[%s1042] sm:$0xf]
        %v1044 = vld [vmem:[%s1042 + $0x4] sm:$0xf]
        %v1045 = vunpack.c.l.bf16 %v1043
        %v1046 = vunpack.c.l.bf16 %v1044
        %v1047 = vadd.f32 %v1036, %v1045
        %v1048 = vadd.f32 %v1037, %v1046
        %v1049 = vmul.f32 %v1045, %v1045
        %v1050 = vmul.f32 %v1046, %v1046
        %v1051 = vadd.f32 %v1040, %v1049
        %v1052 = vadd.f32 %v1041, %v1050
        %s1053 = scalar_lea.vmem %s644, 176 [#allocation3]
        %v1054 = vld [vmem:[%s1053] sm:$0xf]
        %v1055 = vld [vmem:[%s1053 + $0x4] sm:$0xf]
        %v1056 = vunpack.c.l.bf16 %v1054
        %v1057 = vunpack.c.l.bf16 %v1055
        %v1058 = vadd.f32 %v1047, %v1056
        %v1059 = vadd.f32 %v1048, %v1057
        %v1060 = vmul.f32 %v1056, %v1056
        %v1061 = vmul.f32 %v1057, %v1057
        %v1062 = vadd.f32 %v1051, %v1060
        %v1063 = vadd.f32 %v1052, %v1061
        %s1064 = scalar_lea.vmem %s644, 184 [#allocation3]
        %v1065 = vld [vmem:[%s1064] sm:$0xf]
        %v1066 = vld [vmem:[%s1064 + $0x4] sm:$0xf]
        %v1067 = vunpack.c.l.bf16 %v1065
        %v1068 = vunpack.c.l.bf16 %v1066
        %v1069 = vadd.f32 %v1058, %v1067
        %v1070 = vadd.f32 %v1059, %v1068
        %v1071 = vmul.f32 %v1067, %v1067
        %v1072 = vmul.f32 %v1068, %v1068
        %v1073 = vadd.f32 %v1062, %v1071
        %v1074 = vadd.f32 %v1063, %v1072
        %s1075 = scalar_lea.vmem %s644, 192 [#allocation3]
        %v1076 = vld [vmem:[%s1075] sm:$0xf]
        %v1077 = vld [vmem:[%s1075 + $0x4] sm:$0xf]
        %v1078 = vunpack.c.l.bf16 %v1076
        %v1079 = vunpack.c.l.bf16 %v1077
        %v1080 = vadd.f32 %v1069, %v1078
        %v1081 = vadd.f32 %v1070, %v1079
        %v1082 = vmul.f32 %v1078, %v1078
        %v1083 = vmul.f32 %v1079, %v1079
        %v1084 = vadd.f32 %v1073, %v1082
        %v1085 = vadd.f32 %v1074, %v1083
        %s1086 = scalar_lea.vmem %s644, 200 [#allocation3]
        %v1087 = vld [vmem:[%s1086] sm:$0xf]
        %v1088 = vld [vmem:[%s1086 + $0x4] sm:$0xf]
        %v1089 = vunpack.c.l.bf16 %v1087
        %v1090 = vunpack.c.l.bf16 %v1088
        %v1091 = vadd.f32 %v1080, %v1089
        %v1092 = vadd.f32 %v1081, %v1090
        %v1093 = vmul.f32 %v1089, %v1089
        %v1094 = vmul.f32 %v1090, %v1090
        %v1095 = vadd.f32 %v1084, %v1093
        %v1096 = vadd.f32 %v1085, %v1094
        %s1097 = scalar_lea.vmem %s644, 208 [#allocation3]
        %v1098 = vld [vmem:[%s1097] sm:$0xf]
        %v1099 = vld [vmem:[%s1097 + $0x4] sm:$0xf]
        %v1100 = vunpack.c.l.bf16 %v1098
        %v1101 = vunpack.c.l.bf16 %v1099
        %v1102 = vadd.f32 %v1091, %v1100
        %v1103 = vadd.f32 %v1092, %v1101
        %v1104 = vmul.f32 %v1100, %v1100
        %v1105 = vmul.f32 %v1101, %v1101
        %v1106 = vadd.f32 %v1095, %v1104
        %v1107 = vadd.f32 %v1096, %v1105
        %s1108 = scalar_lea.vmem %s644, 216 [#allocation3]
        %v1109 = vld [vmem:[%s1108] sm:$0xf]
        %v1110 = vld [vmem:[%s1108 + $0x4] sm:$0xf]
        %v1111 = vunpack.c.l.bf16 %v1109
        %v1112 = vunpack.c.l.bf16 %v1110
        %v1113 = vadd.f32 %v1102, %v1111
        %v1114 = vadd.f32 %v1103, %v1112
        %v1115 = vmul.f32 %v1111, %v1111
        %v1116 = vmul.f32 %v1112, %v1112
        %v1117 = vadd.f32 %v1106, %v1115
        %v1118 = vadd.f32 %v1107, %v1116
        %s1119 = scalar_lea.vmem %s644, 224 [#allocation3]
        %v1120 = vld [vmem:[%s1119] sm:$0xf]
        %v1121 = vld [vmem:[%s1119 + $0x4] sm:$0xf]
        %v1122 = vunpack.c.l.bf16 %v1120
        %v1123 = vunpack.c.l.bf16 %v1121
        %v1124 = vadd.f32 %v1113, %v1122
        %v1125 = vadd.f32 %v1114, %v1123
        %v1126 = vmul.f32 %v1122, %v1122
        %v1127 = vmul.f32 %v1123, %v1123
        %v1128 = vadd.f32 %v1117, %v1126
        %v1129 = vadd.f32 %v1118, %v1127
        %s1130 = scalar_lea.vmem %s644, 232 [#allocation3]
        %v1131 = vld [vmem:[%s1130] sm:$0xf]
        %v1132 = vld [vmem:[%s1130 + $0x4] sm:$0xf]
        %v1133 = vunpack.c.l.bf16 %v1131
        %v1134 = vunpack.c.l.bf16 %v1132
        %v1135 = vadd.f32 %v1124, %v1133
        %v1136 = vadd.f32 %v1125, %v1134
        %v1137 = vmul.f32 %v1133, %v1133
        %v1138 = vmul.f32 %v1134, %v1134
        %v1139 = vadd.f32 %v1128, %v1137
        %v1140 = vadd.f32 %v1129, %v1138
        %s1141 = scalar_lea.vmem %s644, 240 [#allocation3]
        %v1142 = vld [vmem:[%s1141] sm:$0xf]
        %v1143 = vld [vmem:[%s1141 + $0x4] sm:$0xf]
        %v1144 = vunpack.c.l.bf16 %v1142
        %v1145 = vunpack.c.l.bf16 %v1143
        %v1146 = vadd.f32 %v1135, %v1144
        %v1147 = vadd.f32 %v1136, %v1145
        %v1148 = vmul.f32 %v1144, %v1144
        %v1149 = vmul.f32 %v1145, %v1145
        %v1150 = vadd.f32 %v1139, %v1148
        %v1151 = vadd.f32 %v1140, %v1149
        %s1152 = scalar_lea.vmem %s644, 248 [#allocation3]
        %v1153 = vld [vmem:[%s1152] sm:$0xf]
        %v1154 = vld [vmem:[%s1152 + $0x4] sm:$0xf]
        %v1155 = vunpack.c.l.bf16 %v1153
        %v1156 = vunpack.c.l.bf16 %v1154
        %v1157 = vadd.f32 %v1146, %v1155
        %v1158 = vadd.f32 %v1147, %v1156
        %v1159 = vmul.f32 %v1155, %v1155
        %v1160 = vmul.f32 %v1156, %v1156
        %v1161 = vadd.f32 %v1150, %v1159
        %v1162 = vadd.f32 %v1151, %v1160
        %s1163 = scalar_lea.vmem %s644, 256 [#allocation3]
        %v1164 = vld [vmem:[%s1163] sm:$0xf]
        %v1165 = vld [vmem:[%s1163 + $0x4] sm:$0xf]
        %v1166 = vunpack.c.l.bf16 %v1164
        %v1167 = vunpack.c.l.bf16 %v1165
        %v1168 = vadd.f32 %v1157, %v1166
        %v1169 = vadd.f32 %v1158, %v1167
        %v1170 = vmul.f32 %v1166, %v1166
        %v1171 = vmul.f32 %v1167, %v1167
        %v1172 = vadd.f32 %v1161, %v1170
        %v1173 = vadd.f32 %v1162, %v1171
        %s1174 = scalar_lea.vmem %s644, 264 [#allocation3]
        %v1175 = vld [vmem:[%s1174] sm:$0xf]
        %v1176 = vld [vmem:[%s1174 + $0x4] sm:$0xf]
        %v1177 = vunpack.c.l.bf16 %v1175
        %v1178 = vunpack.c.l.bf16 %v1176
        %v1179 = vadd.f32 %v1168, %v1177
        %v1180 = vadd.f32 %v1169, %v1178
        %v1181 = vmul.f32 %v1177, %v1177
        %v1182 = vmul.f32 %v1178, %v1178
        %v1183 = vadd.f32 %v1172, %v1181
        %v1184 = vadd.f32 %v1173, %v1182
        %s1185 = scalar_lea.vmem %s644, 272 [#allocation3]
        %v1186 = vld [vmem:[%s1185] sm:$0xf]
        %v1187 = vld [vmem:[%s1185 + $0x4] sm:$0xf]
        %v1188 = vunpack.c.l.bf16 %v1186
        %v1189 = vunpack.c.l.bf16 %v1187
        %v1190 = vadd.f32 %v1179, %v1188
        %v1191 = vadd.f32 %v1180, %v1189
        %v1192 = vmul.f32 %v1188, %v1188
        %v1193 = vmul.f32 %v1189, %v1189
        %v1194 = vadd.f32 %v1183, %v1192
        %v1195 = vadd.f32 %v1184, %v1193
        %s1196 = scalar_lea.vmem %s644, 280 [#allocation3]
        %v1197 = vld [vmem:[%s1196] sm:$0xf]
        %v1198 = vld [vmem:[%s1196 + $0x4] sm:$0xf]
        %v1199 = vunpack.c.l.bf16 %v1197
        %v1200 = vunpack.c.l.bf16 %v1198
        %v1201 = vadd.f32 %v1190, %v1199
        %v1202 = vadd.f32 %v1191, %v1200
        %v1203 = vmul.f32 %v1199, %v1199
        %v1204 = vmul.f32 %v1200, %v1200
        %v1205 = vadd.f32 %v1194, %v1203
        %v1206 = vadd.f32 %v1195, %v1204
        %s1207 = scalar_lea.vmem %s644, 288 [#allocation3]
        %v1208 = vld [vmem:[%s1207] sm:$0xf]
        %v1209 = vld [vmem:[%s1207 + $0x4] sm:$0xf]
        %v1210 = vunpack.c.l.bf16 %v1208
        %v1211 = vunpack.c.l.bf16 %v1209
        %v1212 = vadd.f32 %v1201, %v1210
        %v1213 = vadd.f32 %v1202, %v1211
        %v1214 = vmul.f32 %v1210, %v1210
        %v1215 = vmul.f32 %v1211, %v1211
        %v1216 = vadd.f32 %v1205, %v1214
        %v1217 = vadd.f32 %v1206, %v1215
        %s1218 = scalar_lea.vmem %s644, 296 [#allocation3]
        %v1219 = vld [vmem:[%s1218] sm:$0xf]
        %v1220 = vld [vmem:[%s1218 + $0x4] sm:$0xf]
        %v1221 = vunpack.c.l.bf16 %v1219
        %v1222 = vunpack.c.l.bf16 %v1220
        %v1223 = vadd.f32 %v1212, %v1221
        %v1224 = vadd.f32 %v1213, %v1222
        %v1225 = vmul.f32 %v1221, %v1221
        %v1226 = vmul.f32 %v1222, %v1222
        %v1227 = vadd.f32 %v1216, %v1225
        %v1228 = vadd.f32 %v1217, %v1226
        %s1229 = scalar_lea.vmem %s644, 304 [#allocation3]
        %v1230 = vld [vmem:[%s1229] sm:$0xf]
        %v1231 = vld [vmem:[%s1229 + $0x4] sm:$0xf]
        %v1232 = vunpack.c.l.bf16 %v1230
        %v1233 = vunpack.c.l.bf16 %v1231
        %v1234 = vadd.f32 %v1223, %v1232
        %v1235 = vadd.f32 %v1224, %v1233
        %v1236 = vmul.f32 %v1232, %v1232
        %v1237 = vmul.f32 %v1233, %v1233
        %v1238 = vadd.f32 %v1227, %v1236
        %v1239 = vadd.f32 %v1228, %v1237
        %v1240 = vadd.f32 %v1234, %v794
        %v1241 = vadd.f32 %v1235, %v799
        %v1242 = vadd.f32 %v1238, %v804
        %v1243 = vadd.f32 %v1239, %v809
        %v1244 = vmul.f32 %v1240, %v1240
        %v1245 = vmul.f32 %v1241, %v1241
        %v1246 = vsub.f32 %v1244, %v1242
        %v1247 = vsub.f32 %v1245, %v1243
        %v1248 = vadd.f32 %v1246, %v1247
        %v1249 = vrot.slane %v1248, 4
        %v1250 = vadd.f32 %v1248, %v1249
        %v1251 = vrot.slane %v1250, 2
        %v1252 = vadd.f32 %v1250, %v1251
        %v1253 = vrot.slane %v1252, 1
        %v1254 = vadd.f32 %v1252, %v1253
        %v1255 = vmul.f32 %v1254, 0.5
        %v1256 = vld [vmem:[%s637] sm:$0xf]
        %v1257 = vld [vmem:[%s637 + $0x4] sm:$0xf]
        %v1258 = vld [vmem:[%s637 + $0x8] sm:$0xf]
        %v1259 = vld [vmem:[%s637 + $0xc] sm:$0xf]
        %v1260 = vld [vmem:[%s637 + $0x10] sm:$0xf]
        %v1261 = vunpack.c.l.bf16 %v1256
        %v1262 = vunpack.c.l.bf16 %v1257
        %v1263 = vunpack.c.l.bf16 %v1258
        %v1264 = vunpack.c.l.bf16 %v1259
        %v1265 = vunpack.c.l.bf16 %v1260
        %v1266 = vadd.f32 %v1261, %v1262
        %v1267 = vadd.f32 %v1266, %v1263
        %v1268 = vadd.f32 %v1267, %v1264
        %vm1269 = vcmask 1046528
        %v1270 = vsel %vm1269, %v1265, 0.0
        %v1271 = vadd.f32 %v1268, %v1270
        %v1272 = vrot.slane %v1271, 4
        %v1273 = vadd.f32 %v1271, %v1272
        %v1274 = vrot.slane %v1273, 2
        %v1275 = vadd.f32 %v1273, %v1274
        %v1276 = vrot.slane %v1275, 1
        %v1277 = vadd.f32 %v1275, %v1276
        %v1278 = vadd.f32 %v1277, %v789
        %vm1279 = vcmask 1040384
        %v1280 = vsel %vm1279, %v1278, %v1255
        %1281 = vst [vmem:[%s684] sm:$0x3] %v1280
        %p1282 = scmp.lt.s32.totalorder %s15, 1
        %s1283 = scalar_select %p1282, %s15, 1
        %s1284 = smul.addr %s1283, 2
        %s1285 = scalar_lea.vmem %s4, %s1284
        // Predicated region
        $region157: #{fm_forward.1} parent=143 // pred_check
          %p1286 = pneg %p132
        $region158: #{fm_forward.1} parent=143 // pred_check_branch
          %1288 = sbr.rel (%p1286) target = $region160
        $region159: #{fm_forward.1} parent=143 // pred_region
          _
        $region160: #{fm_forward.1} parent=143 // pred_fallthru
          _
      $region144: #{fm_forward.1} parent=5 // pred_fallthru
        _
      %p1289 = scmp.le.s32.totalorder 2, %s10
      // Predicated region
      $region161: #{fm_forward.1} parent=5 // pred_check
        %p1290 = pneg %p1289
      $region162: #{fm_forward.1} parent=5 // pred_check_branch
        %1292 = sbr.rel (%p1290) target = $region164
      $region163: #{fm_forward.1} parent=5 // pred_region
        %s1293 = ssub.s32 %s10, 2
        // Predicated region
        $region165: #{fm_forward.1} parent=163 // pred_check
          %p1294 = pneg %p138
        $region166: #{fm_forward.1} parent=163 // pred_check_branch
          %1296 = sbr.rel (%p1294) target = $region168
        $region167: #{fm_forward.1} parent=163 // pred_region
          %p1297 = scmp.lt.s32.totalorder %s16, 1
          %s1298 = scalar_select %p1297, %s16, 1
          %s1299 = smul.addr %s1298, 2
          %s1300 = scalar_lea.vmem %s4, %s1299
        $region168: #{fm_forward.1} parent=163 // pred_fallthru
          _
      $region164: #{fm_forward.1} parent=5 // pred_fallthru
        _
    $region6: #{fm_forward.1} parent=1 // loop_footer
      %s14 = sadd.s32 1, %s10
    $region7: #{fm_forward.1} parent=1 // loop_footer_branch
      %9 = sbr.rel target = $region3
    $region8: #{fm_forward.1} parent=1 // loop_exit
      _

</llo_original>
